<compile_context>
chip_gen: v6e
topology: v6e:2x2x1
jax: 0.10.0
libtpu: 0.0.40
codegen_flags: <defaults>
</compile_context>

<pallas_src>
import functools

import jax
import jax.numpy as jnp
from jax import lax
from jax.experimental import pallas as pl
from jax.experimental.pallas import tpu as pltpu

# ---------------------------------------------------------------------------
# problem sizes (small, consistent with the module)
# ---------------------------------------------------------------------------
SEQ = 8          # tgt_len / src_len
BATCH = 2
EMBED = 32       # embed_dim
HEADS = 4        # encoder_attention_heads
FFN = 64         # encoder_ffn_embed_dim
LN_EPS = 1e-5


# ---------------------------------------------------------------------------
# Pallas kernel: one batch element per grid step ("parallel" over B)
#
# misc_ref rows: 0=b_qkv(3E) 1=b_out(E) 2=b_fc1(F) 3=b_fc2(E)
#                4=ln0_w 5=ln0_b 6=ln1_w 7=ln1_b   (all zero-padded to W lanes)
# ---------------------------------------------------------------------------
def _encoder_layer_kernel(x_ref, kpm_ref, wqkv_ref, wo_ref, w1_ref, w2_ref,
                          misc_ref, o_ref, hbuf, *, num_heads, eps):
    x = x_ref[...]                               # (S, E) tokens of this batch
    S, E = x.shape
    hd = E // num_heads
    F = w1_ref.shape[1]

    # --- fused QKV projection: one (S,E)@(E,3E) MXU matmul -----------------
    # (1/sqrt(hd) scaling already folded into Wq / bq at prepare time)
    hbuf[...] = (jnp.dot(x, wqkv_ref[...], preferred_element_type=jnp.float32)
                 + misc_ref[0:1, :3 * E])        # (S, 3E) in VMEM scratch

    def head_stack(base):                        # lanes [base, base+E) -> (H,S,hd)
        return jnp.stack(
            [hbuf[:, base + h * hd: base + (h + 1) * hd]
             for h in range(num_heads)], axis=0)

    q = head_stack(0)
    k = head_stack(E)
    v = head_stack(2 * E)

    # --- per-batch scaled dot-product attention -----------------------------
    s = jnp.einsum('htd,hsd->hts', q, k,
                   preferred_element_type=jnp.float32)           # (H, S, S)
    s = s + kpm_ref[...][None]                   # (1,1,S) key-padding bias
    s = s - jnp.max(s, axis=-1, keepdims=True)
    p = jnp.exp(s)
    # approx reciprocal (EUP) -> ~1e-3-level relative error vs exact divide.
    p = p * pl.reciprocal(jnp.sum(p, axis=-1, keepdims=True), approx=True)
    # NOTE: a fully-masked query row would give a uniform softmax rather than
    # PyTorch's NaN; harmless for any valid padding mask.
    ah = jnp.einsum('hts,hsd->htd', p, v,
                    preferred_element_type=jnp.float32)          # (H, S, hd)

    # --- merge heads lane-dense, single (S,E)@(E,E) output projection -------
    for h in range(num_heads):
        hbuf[:, h * hd:(h + 1) * hd] = ah[h]
    attn = (jnp.dot(hbuf[:, :E], wo_ref[...],
                    preferred_element_type=jnp.float32)
            + misc_ref[1:2, :E])                                 # (S, E)

    # --- dropout is identity (eval) -> residual + LayerNorm 0 ---------------
    # variance as E[x^2]-E[x]^2: the two lane reductions are independent.
    x1 = x + attn
    mu0 = jnp.mean(x1, axis=-1, keepdims=True)
    ms0 = jnp.mean(x1 * x1, axis=-1, keepdims=True)
    xn0 = ((x1 - mu0) * lax.rsqrt(ms0 - mu0 * mu0 + eps)
           * misc_ref[4:5, :E] + misc_ref[5:6, :E])

    # --- FFN: relu(fc1) -> fc2, residual + LayerNorm 1 -----------------------
    h1 = jnp.dot(xn0, w1_ref[...], preferred_element_type=jnp.float32) + misc_ref[2:3, :F]
    h1 = jnp.maximum(h1, 0.0)
    h2 = jnp.dot(h1, w2_ref[...], preferred_element_type=jnp.float32) + misc_ref[3:4, :E]
    x2 = xn0 + h2
    mu1 = jnp.mean(x2, axis=-1, keepdims=True)
    ms1 = jnp.mean(x2 * x2, axis=-1, keepdims=True)
    o_ref[...] = ((x2 - mu1) * lax.rsqrt(ms1 - mu1 * mu1 + eps)
                  * misc_ref[6:7, :E] + misc_ref[7:8, :E])


# ---------------------------------------------------------------------------
# one-time parameter preparation (hoisted out of the per-call path)
# ---------------------------------------------------------------------------
def prepare_params(params, num_heads=HEADS):
    f32 = jnp.float32
    E = params["out_w"].shape[0]
    F = params["fc1_w"].shape[0]
    hd = E // num_heads
    scaling = hd ** -0.5

    # in_proj: (3E, E) -> lane-dense (E, 3E); fold 1/sqrt(hd) into Q columns.
    w_qkv = params["in_w"].astype(f32).T                      # (E, 3E)
    w_qkv = w_qkv.at[:, :E].multiply(scaling)
    b_qkv = params["in_b"].astype(f32)
    b_qkv = b_qkv.at[:E].multiply(scaling)

    # pack every 1-row parameter into a single (8, W) array (fewer tiny DMAs)
    W = max(3 * E, F)

    def row(v):
        v = v.astype(f32)
        return jnp.pad(v, (0, W - v.shape[0]))

    misc = jnp.stack([
        row(b_qkv), row(params["out_b"]), row(params["fc1_b"]), row(params["fc2_b"]),
        row(params["ln0_w"]), row(params["ln0_b"]),
        row(params["ln1_w"]), row(params["ln1_b"]),
    ])                                                          # (8, W)

    return {
        "w_qkv": w_qkv,                                         # (E, 3E)
        "wo": params["out_w"].astype(f32).T,                    # (E, E)
        "w1": params["fc1_w"].astype(f32).T,                    # (E, F)
        "w2": params["fc2_w"].astype(f32).T,                    # (F, E)
        "misc": misc,                                           # (8, W)
    }


# ---------------------------------------------------------------------------
# wrapper: per-batch grid, tiny per-batch key-padding bias, single pallas_call
# ---------------------------------------------------------------------------
def transformer_encoder_layer(x_tbc, key_padding_mask, prep,
                              num_heads=HEADS, eps=LN_EPS):
    S, B, E = x_tbc.shape
    F = prep["w1"].shape[1]

    x_bse = jnp.transpose(x_tbc, (1, 0, 2)).astype(jnp.float32)      # (B, S, E)
    # additive key-padding bias, O(B*S) bytes (not O((B*S)^2))
    kpm_bias = jnp.where(key_padding_mask, -1e30, 0.0).astype(jnp.float32)[:, None, :]

    kernel = functools.partial(_encoder_layer_kernel, num_heads=num_heads, eps=eps)

    out = pl.pallas_call(
        kernel,
        out_shape=jax.ShapeDtypeStruct((B, S, E), jnp.float32),
        grid=(B,),
        in_specs=[
            pl.BlockSpec((None, S, E), lambda b: (b, 0, 0)),          # x
            pl.BlockSpec((None, 1, S), lambda b: (b, 0, 0)),          # padding bias
            pl.BlockSpec((E, 3 * E), lambda b: (0, 0)),               # w_qkv
            pl.BlockSpec((E, E), lambda b: (0, 0)),                   # wo
            pl.BlockSpec((E, F), lambda b: (0, 0)),                   # w1
            pl.BlockSpec((F, E), lambda b: (0, 0)),                   # w2
            pl.BlockSpec(prep["misc"].shape, lambda b: (0, 0)),       # packed biases/LN
        ],
        out_specs=pl.BlockSpec((None, S, E), lambda b: (b, 0, 0)),
        scratch_shapes=[pltpu.VMEM((S, 3 * E), jnp.float32)],         # qkv / merged heads
        compiler_params=pltpu.CompilerParams(
            dimension_semantics=("parallel",)),
    )(x_bse, kpm_bias, prep["w_qkv"], prep["wo"], prep["w1"], prep["w2"],
      prep["misc"])

    return jnp.transpose(out, (1, 0, 2))                             # back to (T, B, C)


# ---------------------------------------------------------------------------
# deterministic parameter init (xavier_uniform_ weights, zero biases, LN=1/0)
# ---------------------------------------------------------------------------
def _xavier_uniform(key, shape):
    fan_out, fan_in = shape
    bound = (6.0 / (fan_in + fan_out)) ** 0.5
    return jax.random.uniform(key, shape, jnp.float32, -bound, bound)


def init_params(key):
    ks = jax.random.split(key, 4)
    return {
        "in_w": _xavier_uniform(ks[0], (3 * EMBED, EMBED)),
        "in_b": jnp.zeros((3 * EMBED,), jnp.float32),
        "out_w": _xavier_uniform(ks[1], (EMBED, EMBED)),
        "out_b": jnp.zeros((EMBED,), jnp.float32),
        "fc1_w": _xavier_uniform(ks[2], (FFN, EMBED)),
        "fc1_b": jnp.zeros((FFN,), jnp.float32),
        "fc2_w": _xavier_uniform(ks[3], (EMBED, FFN)),
        "fc2_b": jnp.zeros((EMBED,), jnp.float32),
        "ln0_w": jnp.ones((EMBED,), jnp.float32),
        "ln0_b": jnp.zeros((EMBED,), jnp.float32),
        "ln1_w": jnp.ones((EMBED,), jnp.float32),
        "ln1_b": jnp.zeros((EMBED,), jnp.float32),
    }


# ---------------------------------------------------------------------------
# pure-JAX reference mirroring the PyTorch forward (eval mode, post-norm)
# ---------------------------------------------------------------------------
def reference(x, kpm, p, num_heads=HEADS, eps=LN_EPS):
    S, B, E = x.shape
    hd = E // num_heads
    scaling = hd ** -0.5

    def ln(z, w, b):
        m = jnp.mean(z, -1, keepdims=True)
        v = jnp.mean((z - m) ** 2, -1, keepdims=True)
        return (z - m) / jnp.sqrt(v + eps) * w + b

    qkv = x @ p["in_w"].T + p["in_b"]
    q, k, v = jnp.split(qkv, 3, axis=-1)
    q = (q * scaling).reshape(S, B * num_heads, hd).transpose(1, 0, 2)
    k = k.reshape(S, B * num_heads, hd).transpose(1, 0, 2)
    v = v.reshape(S, B * num_heads, hd).transpose(1, 0, 2)
    aw = q @ jnp.swapaxes(k, 1, 2)
    aw = aw.reshape(B, num_heads, S, S)
    aw = jnp.where(kpm[:, None, None, :], -jnp.inf, aw)
    aw = jax.nn.softmax(aw.reshape(B * num_heads, S, S), axis=-1)
    attn = (aw @ v).transpose(1, 0, 2).reshape(S, B, E)
    attn = attn @ p["out_w"].T + p["out_b"]
    x = ln(x + attn, p["ln0_w"], p["ln0_b"])
    res = x
    h = jax.nn.relu(x @ p["fc1_w"].T + p["fc1_b"])
    h = h @ p["fc2_w"].T + p["fc2_b"]
    return ln(res + h, p["ln1_w"], p["ln1_b"])


if __name__ == "__main__":
    key = jax.random.PRNGKey(0)
    kx, kp = jax.random.split(key)

    x = jax.random.normal(kx, (SEQ, BATCH, EMBED), jnp.float32)      # (T, B, C)
    # padding mask: batch 0 has no padding, batch 1 has the last 2 keys padded
    key_padding_mask = jnp.array(
        [[False] * SEQ,
         [False] * (SEQ - 2) + [True] * 2], dtype=jnp.bool_)          # (B, S)

    params = init_params(kp)
    prep = prepare_params(params)        # one-time kernel-layout param prep

    fwd = jax.jit(transformer_encoder_layer)
    out = fwd(x, key_padding_mask, prep)
    out = jax.block_until_ready(out)

    ref = reference(x, key_padding_mask, params)
    assert out.shape == (SEQ, BATCH, EMBED)
    # approx-reciprocal softmax normalization trades ~1e-4-level precision
    assert jnp.allclose(out, ref, atol=5e-3, rtol=5e-3), "mismatch vs JAX reference"

    print("KERNEL_OK")
</pallas_src>

<mosaic_0001>
module attributes {stable_mosaic.version = 11 : i64} {
  func.func @_encoder_layer_kernel(%arg0: i32, %arg1: memref<1x8x32xf32, #tpu.memory_space<vmem>>, %arg2: memref<1x1x8xf32, #tpu.memory_space<vmem>>, %arg3: memref<32x96xf32, #tpu.memory_space<vmem>>, %arg4: memref<32x32xf32, #tpu.memory_space<vmem>>, %arg5: memref<32x64xf32, #tpu.memory_space<vmem>>, %arg6: memref<64x32xf32, #tpu.memory_space<vmem>>, %arg7: memref<8x96xf32, #tpu.memory_space<vmem>>, %arg8: memref<1x8x32xf32, #tpu.memory_space<vmem>>, %arg9: memref<8x96xf32, #tpu.memory_space<vmem>>) attributes {dimension_semantics = [#tpu.dimension_semantics<parallel>], iteration_bounds = array<i64: 2>, scalar_prefetch = 0 : i64, scratch_operands = 1 : i64, tpu.core_type = #tpu.core_type<tc>, window_params = [{transform_indices = @transform_0, window_bounds = array<i64: 1, 8, 32>}, {transform_indices = @transform_1, window_bounds = array<i64: 1, 1, 8>}, {pipeline_mode = #tpu.pipeline_mode<synchronous>, transform_indices = @transform_2, window_bounds = array<i64: 32, 96>}, {pipeline_mode = #tpu.pipeline_mode<synchronous>, transform_indices = @transform_3, window_bounds = array<i64: 32, 32>}, {pipeline_mode = #tpu.pipeline_mode<synchronous>, transform_indices = @transform_4, window_bounds = array<i64: 32, 64>}, {pipeline_mode = #tpu.pipeline_mode<synchronous>, transform_indices = @transform_5, window_bounds = array<i64: 64, 32>}, {pipeline_mode = #tpu.pipeline_mode<synchronous>, transform_indices = @transform_6, window_bounds = array<i64: 8, 96>}, {transform_indices = @transform_7, window_bounds = array<i64: 1, 8, 32>}]} {
    %c0 = arith.constant 0 : index
    %c0_0 = arith.constant 0 : index
    %c0_1 = arith.constant 0 : index
    %0 = vector.load %arg1[%c0, %c0_0, %c0_1] : memref<1x8x32xf32, #tpu.memory_space<vmem>>, vector<1x8x32xf32>
    %1 = vector.shape_cast %0 : vector<1x8x32xf32> to vector<8x32xf32>
    %c0_2 = arith.constant 0 : index
    %c0_3 = arith.constant 0 : index
    %2 = vector.load %arg3[%c0_2, %c0_3] : memref<32x96xf32, #tpu.memory_space<vmem>>, vector<32x96xf32>
    %cst = arith.constant dense<0.000000e+00> : vector<8x96xf32>
    %3 = tpu.matmul %1, %2, %cst {dimension_numbers = #tpu.dot_dimension_numbers<[1], [0], [0], [1], [0, 0, 1, 1], [], []>} : vector<8x32xf32>, vector<32x96xf32>, vector<8x96xf32> -> vector<8x96xf32>
    %c0_4 = arith.constant 0 : index
    %c0_5 = arith.constant 0 : index
    %4 = vector.load %arg7[%c0_4, %c0_5] : memref<8x96xf32, #tpu.memory_space<vmem>>, vector<1x96xf32>
    %5 = vector.broadcast %4 : vector<1x96xf32> to vector<8x96xf32>
    %6 = arith.addf %3, %5 : vector<8x96xf32>
    %c0_6 = arith.constant 0 : index
    %c0_7 = arith.constant 0 : index
    %7 = vector.load %arg9[%c0_6, %c0_7] : memref<8x96xf32, #tpu.memory_space<vmem>>, vector<8x96xf32>
    tpu.vector_store %arg9[%c0_6, %c0_7], %6 {strides = array<i32>} : memref<8x96xf32, #tpu.memory_space<vmem>>, vector<8x96xf32>,
    %c0_8 = arith.constant 0 : index
    %c0_9 = arith.constant 0 : index
    %8 = vector.load %arg9[%c0_8, %c0_9] : memref<8x96xf32, #tpu.memory_space<vmem>>, vector<8x8xf32>
    %c0_10 = arith.constant 0 : index
    %c8 = arith.constant 8 : index
    %9 = vector.load %arg9[%c0_10, %c8] : memref<8x96xf32, #tpu.memory_space<vmem>>, vector<8x8xf32>
    %c0_11 = arith.constant 0 : index
    %c16 = arith.constant 16 : index
    %10 = vector.load %arg9[%c0_11, %c16] : memref<8x96xf32, #tpu.memory_space<vmem>>, vector<8x8xf32>
    %c0_12 = arith.constant 0 : index
    %c24 = arith.constant 24 : index
    %11 = vector.load %arg9[%c0_12, %c24] : memref<8x96xf32, #tpu.memory_space<vmem>>, vector<8x8xf32>
    %12 = vector.shape_cast %8 : vector<8x8xf32> to vector<1x8x8xf32>
    %13 = vector.shape_cast %9 : vector<8x8xf32> to vector<1x8x8xf32>
    %14 = vector.shape_cast %10 : vector<8x8xf32> to vector<1x8x8xf32>
    %15 = vector.shape_cast %11 : vector<8x8xf32> to vector<1x8x8xf32>
    %16 = tpu.concatenate %12, %13, %14, %15 in 0 : vector<1x8x8xf32>, vector<1x8x8xf32>, vector<1x8x8xf32>, vector<1x8x8xf32> -> vector<4x8x8xf32>
    %c0_13 = arith.constant 0 : index
    %c32 = arith.constant 32 : index
    %17 = vector.load %arg9[%c0_13, %c32] : memref<8x96xf32, #tpu.memory_space<vmem>>, vector<8x8xf32>
    %c0_14 = arith.constant 0 : index
    %c40 = arith.constant 40 : index
    %18 = vector.load %arg9[%c0_14, %c40] : memref<8x96xf32, #tpu.memory_space<vmem>>, vector<8x8xf32>
    %c0_15 = arith.constant 0 : index
    %c48 = arith.constant 48 : index
    %19 = vector.load %arg9[%c0_15, %c48] : memref<8x96xf32, #tpu.memory_space<vmem>>, vector<8x8xf32>
    %c0_16 = arith.constant 0 : index
    %c56 = arith.constant 56 : index
    %20 = vector.load %arg9[%c0_16, %c56] : memref<8x96xf32, #tpu.memory_space<vmem>>, vector<8x8xf32>
    %21 = vector.shape_cast %17 : vector<8x8xf32> to vector<1x8x8xf32>
    %22 = vector.shape_cast %18 : vector<8x8xf32> to vector<1x8x8xf32>
    %23 = vector.shape_cast %19 : vector<8x8xf32> to vector<1x8x8xf32>
    %24 = vector.shape_cast %20 : vector<8x8xf32> to vector<1x8x8xf32>
    %25 = tpu.concatenate %21, %22, %23, %24 in 0 : vector<1x8x8xf32>, vector<1x8x8xf32>, vector<1x8x8xf32>, vector<1x8x8xf32> -> vector<4x8x8xf32>
    %c0_17 = arith.constant 0 : index
    %c64 = arith.constant 64 : index
    %26 = vector.load %arg9[%c0_17, %c64] : memref<8x96xf32, #tpu.memory_space<vmem>>, vector<8x8xf32>
    %c0_18 = arith.constant 0 : index
    %c72 = arith.constant 72 : index
    %27 = vector.load %arg9[%c0_18, %c72] : memref<8x96xf32, #tpu.memory_space<vmem>>, vector<8x8xf32>
    %c0_19 = arith.constant 0 : index
    %c80 = arith.constant 80 : index
    %28 = vector.load %arg9[%c0_19, %c80] : memref<8x96xf32, #tpu.memory_space<vmem>>, vector<8x8xf32>
    %c0_20 = arith.constant 0 : index
    %c88 = arith.constant 88 : index
    %29 = vector.load %arg9[%c0_20, %c88] : memref<8x96xf32, #tpu.memory_space<vmem>>, vector<8x8xf32>
    %30 = vector.shape_cast %26 : vector<8x8xf32> to vector<1x8x8xf32>
    %31 = vector.shape_cast %27 : vector<8x8xf32> to vector<1x8x8xf32>
    %32 = vector.shape_cast %28 : vector<8x8xf32> to vector<1x8x8xf32>
    %33 = vector.shape_cast %29 : vector<8x8xf32> to vector<1x8x8xf32>
    %34 = tpu.concatenate %30, %31, %32, %33 in 0 : vector<1x8x8xf32>, vector<1x8x8xf32>, vector<1x8x8xf32>, vector<1x8x8xf32> -> vector<4x8x8xf32>
    "tpu.trace_start"() <{level = 10 : i32, message = "htd,hsd->hts"}> : () -> ()
    %cst_21 = arith.constant dense<0.000000e+00> : vector<4x8x8xf32>
    %35 = tpu.matmul %16, %25, %cst_21 {dimension_numbers = #tpu.dot_dimension_numbers<[2], [2], [1], [1], [0, 0, 0, 1, 1, 1], [0], [0]>} : vector<4x8x8xf32>, vector<4x8x8xf32>, vector<4x8x8xf32> -> vector<4x8x8xf32>
    "tpu.trace_stop"() : () -> ()
    %c0_22 = arith.constant 0 : index
    %c0_23 = arith.constant 0 : index
    %c0_24 = arith.constant 0 : index
    %36 = vector.load %arg2[%c0_22, %c0_23, %c0_24] : memref<1x1x8xf32, #tpu.memory_space<vmem>>, vector<1x1x8xf32>
    %37 = vector.shape_cast %36 : vector<1x1x8xf32> to vector<1x8xf32>
    %38 = vector.shape_cast %37 : vector<1x8xf32> to vector<1x1x8xf32>
    %39 = vector.broadcast %38 : vector<1x1x8xf32> to vector<4x8x8xf32>
    %40 = arith.addf %35, %39 : vector<4x8x8xf32>
    %cst_25 = arith.constant dense<0xFF800000> : vector<4x8xf32>
    %41 = vector.multi_reduction <maximumf>, %40, %cst_25 [2] : vector<4x8x8xf32> to vector<4x8xf32>
    %42 = vector.shape_cast %41 : vector<4x8xf32> to vector<4x8x1xf32>
    %43 = vector.broadcast %42 : vector<4x8x1xf32> to vector<4x8x8xf32>
    %44 = arith.subf %40, %43 : vector<4x8x8xf32>
    %45 = math.exp %44 : vector<4x8x8xf32>
    %cst_26 = arith.constant dense<0.000000e+00> : vector<4x8xf32>
    %46 = vector.multi_reduction <add>, %45, %cst_26 [2] : vector<4x8x8xf32> to vector<4x8xf32>
    %47 = vector.shape_cast %46 : vector<4x8xf32> to vector<4x8x1xf32>
    %48 = tpu.reciprocal %47 {approx = true} : vector<4x8x1xf32> -> vector<4x8x1xf32>
    %49 = vector.broadcast %48 : vector<4x8x1xf32> to vector<4x8x8xf32>
    %50 = arith.mulf %45, %49 : vector<4x8x8xf32>
    "tpu.trace_start"() <{level = 10 : i32, message = "hts,hsd->htd"}> : () -> ()
    %cst_27 = arith.constant dense<0.000000e+00> : vector<4x8x8xf32>
    %51 = tpu.matmul %50, %34, %cst_27 {dimension_numbers = #tpu.dot_dimension_numbers<[2], [1], [1], [2], [0, 0, 0, 1, 1, 2], [0], [0]>} : vector<4x8x8xf32>, vector<4x8x8xf32>, vector<4x8x8xf32> -> vector<4x8x8xf32>
    "tpu.trace_stop"() : () -> ()
    %52 = vector.extract_strided_slice %51 {offsets = [0, 0, 0], sizes = [1, 8, 8], strides = [1, 1, 1]} : vector<4x8x8xf32> to vector<1x8x8xf32>
    %53 = vector.shape_cast %52 : vector<1x8x8xf32> to vector<8x8xf32>
    %c0_28 = arith.constant 0 : index
    %c0_29 = arith.constant 0 : index
    %54 = vector.load %arg9[%c0_28, %c0_29] : memref<8x96xf32, #tpu.memory_space<vmem>>, vector<8x8xf32>
    tpu.vector_store %arg9[%c0_28, %c0_29], %53 {strides = array<i32>} : memref<8x96xf32, #tpu.memory_space<vmem>>, vector<8x8xf32>,
    %55 = vector.extract_strided_slice %51 {offsets = [1, 0, 0], sizes = [1, 8, 8], strides = [1, 1, 1]} : vector<4x8x8xf32> to vector<1x8x8xf32>
    %56 = vector.shape_cast %55 : vector<1x8x8xf32> to vector<8x8xf32>
    %c0_30 = arith.constant 0 : index
    %c8_31 = arith.constant 8 : index
    %57 = vector.load %arg9[%c0_30, %c8_31] : memref<8x96xf32, #tpu.memory_space<vmem>>, vector<8x8xf32>
    tpu.vector_store %arg9[%c0_30, %c8_31], %56 {strides = array<i32>} : memref<8x96xf32, #tpu.memory_space<vmem>>, vector<8x8xf32>,
    %58 = vector.extract_strided_slice %51 {offsets = [2, 0, 0], sizes = [1, 8, 8], strides = [1, 1, 1]} : vector<4x8x8xf32> to vector<1x8x8xf32>
    %59 = vector.shape_cast %58 : vector<1x8x8xf32> to vector<8x8xf32>
    %c0_32 = arith.constant 0 : index
    %c16_33 = arith.constant 16 : index
    %60 = vector.load %arg9[%c0_32, %c16_33] : memref<8x96xf32, #tpu.memory_space<vmem>>, vector<8x8xf32>
    tpu.vector_store %arg9[%c0_32, %c16_33], %59 {strides = array<i32>} : memref<8x96xf32, #tpu.memory_space<vmem>>, vector<8x8xf32>,
    %61 = vector.extract_strided_slice %51 {offsets = [3, 0, 0], sizes = [1, 8, 8], strides = [1, 1, 1]} : vector<4x8x8xf32> to vector<1x8x8xf32>
    %62 = vector.shape_cast %61 : vector<1x8x8xf32> to vector<8x8xf32>
    %c0_34 = arith.constant 0 : index
    %c24_35 = arith.constant 24 : index
    %63 = vector.load %arg9[%c0_34, %c24_35] : memref<8x96xf32, #tpu.memory_space<vmem>>, vector<8x8xf32>
    tpu.vector_store %arg9[%c0_34, %c24_35], %62 {strides = array<i32>} : memref<8x96xf32, #tpu.memory_space<vmem>>, vector<8x8xf32>,
    %c0_36 = arith.constant 0 : index
    %c0_37 = arith.constant 0 : index
    %64 = vector.load %arg9[%c0_36, %c0_37] : memref<8x96xf32, #tpu.memory_space<vmem>>, vector<8x32xf32>
    %c0_38 = arith.constant 0 : index
    %c0_39 = arith.constant 0 : index
    %65 = vector.load %arg4[%c0_38, %c0_39] : memref<32x32xf32, #tpu.memory_space<vmem>>, vector<32x32xf32>
    %cst_40 = arith.constant dense<0.000000e+00> : vector<8x32xf32>
    %66 = tpu.matmul %64, %65, %cst_40 {dimension_numbers = #tpu.dot_dimension_numbers<[1], [0], [0], [1], [0, 0, 1, 1], [], []>} : vector<8x32xf32>, vector<32x32xf32>, vector<8x32xf32> -> vector<8x32xf32>
    %c1 = arith.constant 1 : index
    %c0_41 = arith.constant 0 : index
    %67 = vector.load %arg7[%c1, %c0_41] : memref<8x96xf32, #tpu.memory_space<vmem>>, vector<1x32xf32>
    %68 = vector.broadcast %67 : vector<1x32xf32> to vector<8x32xf32>
    %69 = arith.addf %66, %68 : vector<8x32xf32>
    %70 = arith.addf %1, %69 : vector<8x32xf32>
    %cst_42 = arith.constant dense<0.000000e+00> : vector<8xf32>
    %71 = vector.multi_reduction <add>, %70, %cst_42 [1] : vector<8x32xf32> to vector<8xf32>
    %72 = vector.shape_cast %71 : vector<8xf32> to vector<8x1xf32>
    %cst_43 = arith.constant 3.200000e+01 : f32
    %73 = vector.broadcast %cst_43 : f32 to vector<8x1xf32>
    %74 = arith.divf %72, %73 : vector<8x1xf32>
    %75 = arith.mulf %70, %70 : vector<8x32xf32>
    %cst_44 = arith.constant dense<0.000000e+00> : vector<8xf32>
    %76 = vector.multi_reduction <add>, %75, %cst_44 [1] : vector<8x32xf32> to vector<8xf32>
    %77 = vector.shape_cast %76 : vector<8xf32> to vector<8x1xf32>
    %cst_45 = arith.constant 3.200000e+01 : f32
    %78 = vector.broadcast %cst_45 : f32 to vector<8x1xf32>
    %79 = arith.divf %77, %78 : vector<8x1xf32>
    %80 = vector.broadcast %74 : vector<8x1xf32> to vector<8x32xf32>
    %81 = arith.subf %70, %80 : vector<8x32xf32>
    %82 = arith.mulf %74, %74 : vector<8x1xf32>
    %83 = arith.subf %79, %82 : vector<8x1xf32>
    %cst_46 = arith.constant 9.99999974E-6 : f32
    %84 = vector.broadcast %cst_46 : f32 to vector<8x1xf32>
    %85 = arith.addf %83, %84 : vector<8x1xf32>
    %86 = math.rsqrt %85 : vector<8x1xf32>
    %87 = vector.broadcast %86 : vector<8x1xf32> to vector<8x32xf32>
    %88 = arith.mulf %81, %87 : vector<8x32xf32>
    %c4 = arith.constant 4 : index
    %c0_47 = arith.constant 0 : index
    %89 = vector.load %arg7[%c4, %c0_47] : memref<8x96xf32, #tpu.memory_space<vmem>>, vector<1x32xf32>
    %90 = vector.broadcast %89 : vector<1x32xf32> to vector<8x32xf32>
    %91 = arith.mulf %88, %90 : vector<8x32xf32>
    %c5 = arith.constant 5 : index
    %c0_48 = arith.constant 0 : index
    %92 = vector.load %arg7[%c5, %c0_48] : memref<8x96xf32, #tpu.memory_space<vmem>>, vector<1x32xf32>
    %93 = vector.broadcast %92 : vector<1x32xf32> to vector<8x32xf32>
    %94 = arith.addf %91, %93 : vector<8x32xf32>
    %c0_49 = arith.constant 0 : index
    %c0_50 = arith.constant 0 : index
    %95 = vector.load %arg5[%c0_49, %c0_50] : memref<32x64xf32, #tpu.memory_space<vmem>>, vector<32x64xf32>
    %cst_51 = arith.constant dense<0.000000e+00> : vector<8x64xf32>
    %96 = tpu.matmul %94, %95, %cst_51 {dimension_numbers = #tpu.dot_dimension_numbers<[1], [0], [0], [1], [0, 0, 1, 1], [], []>} : vector<8x32xf32>, vector<32x64xf32>, vector<8x64xf32> -> vector<8x64xf32>
    %c2 = arith.constant 2 : index
    %c0_52 = arith.constant 0 : index
    %97 = vector.load %arg7[%c2, %c0_52] : memref<8x96xf32, #tpu.memory_space<vmem>>, vector<1x64xf32>
    %98 = vector.broadcast %97 : vector<1x64xf32> to vector<8x64xf32>
    %99 = arith.addf %96, %98 : vector<8x64xf32>
    %cst_53 = arith.constant 0.000000e+00 : f32
    %100 = vector.broadcast %cst_53 : f32 to vector<8x64xf32>
    %101 = arith.maximumf %99, %100 : vector<8x64xf32>
    %c0_54 = arith.constant 0 : index
    %c0_55 = arith.constant 0 : index
    %102 = vector.load %arg6[%c0_54, %c0_55] : memref<64x32xf32, #tpu.memory_space<vmem>>, vector<64x32xf32>
    %cst_56 = arith.constant dense<0.000000e+00> : vector<8x32xf32>
    %103 = tpu.matmul %101, %102, %cst_56 {dimension_numbers = #tpu.dot_dimension_numbers<[1], [0], [0], [1], [0, 0, 1, 1], [], []>} : vector<8x64xf32>, vector<64x32xf32>, vector<8x32xf32> -> vector<8x32xf32>
    %c3 = arith.constant 3 : index
    %c0_57 = arith.constant 0 : index
    %104 = vector.load %arg7[%c3, %c0_57] : memref<8x96xf32, #tpu.memory_space<vmem>>, vector<1x32xf32>
    %105 = vector.broadcast %104 : vector<1x32xf32> to vector<8x32xf32>
    %106 = arith.addf %103, %105 : vector<8x32xf32>
    %107 = arith.addf %94, %106 : vector<8x32xf32>
    %cst_58 = arith.constant dense<0.000000e+00> : vector<8xf32>
    %108 = vector.multi_reduction <add>, %107, %cst_58 [1] : vector<8x32xf32> to vector<8xf32>
    %109 = vector.shape_cast %108 : vector<8xf32> to vector<8x1xf32>
    %cst_59 = arith.constant 3.200000e+01 : f32
    %110 = vector.broadcast %cst_59 : f32 to vector<8x1xf32>
    %111 = arith.divf %109, %110 : vector<8x1xf32>
    %112 = arith.mulf %107, %107 : vector<8x32xf32>
    %cst_60 = arith.constant dense<0.000000e+00> : vector<8xf32>
    %113 = vector.multi_reduction <add>, %112, %cst_60 [1] : vector<8x32xf32> to vector<8xf32>
    %114 = vector.shape_cast %113 : vector<8xf32> to vector<8x1xf32>
    %cst_61 = arith.constant 3.200000e+01 : f32
    %115 = vector.broadcast %cst_61 : f32 to vector<8x1xf32>
    %116 = arith.divf %114, %115 : vector<8x1xf32>
    %117 = vector.broadcast %111 : vector<8x1xf32> to vector<8x32xf32>
    %118 = arith.subf %107, %117 : vector<8x32xf32>
    %119 = arith.mulf %111, %111 : vector<8x1xf32>
    %120 = arith.subf %116, %119 : vector<8x1xf32>
    %cst_62 = arith.constant 9.99999974E-6 : f32
    %121 = vector.broadcast %cst_62 : f32 to vector<8x1xf32>
    %122 = arith.addf %120, %121 : vector<8x1xf32>
    %123 = math.rsqrt %122 : vector<8x1xf32>
    %124 = vector.broadcast %123 : vector<8x1xf32> to vector<8x32xf32>
    %125 = arith.mulf %118, %124 : vector<8x32xf32>
    %c6 = arith.constant 6 : index
    %c0_63 = arith.constant 0 : index
    %126 = vector.load %arg7[%c6, %c0_63] : memref<8x96xf32, #tpu.memory_space<vmem>>, vector<1x32xf32>
    %127 = vector.broadcast %126 : vector<1x32xf32> to vector<8x32xf32>
    %128 = arith.mulf %125, %127 : vector<8x32xf32>
    %c7 = arith.constant 7 : index
    %c0_64 = arith.constant 0 : index
    %129 = vector.load %arg7[%c7, %c0_64] : memref<8x96xf32, #tpu.memory_space<vmem>>, vector<1x32xf32>
    %130 = vector.broadcast %129 : vector<1x32xf32> to vector<8x32xf32>
    %131 = arith.addf %128, %130 : vector<8x32xf32>
    %c0_65 = arith.constant 0 : index
    %c0_66 = arith.constant 0 : index
    %c0_67 = arith.constant 0 : index
    %132 = vector.load %arg8[%c0_65, %c0_66, %c0_67] : memref<1x8x32xf32, #tpu.memory_space<vmem>>, vector<1x8x32xf32>
    %133 = vector.shape_cast %132 : vector<1x8x32xf32> to vector<8x32xf32>
    %134 = vector.shape_cast %131 : vector<8x32xf32> to vector<1x8x32xf32>
    tpu.vector_store %arg8[%c0_65, %c0_66, %c0_67], %134 {strides = array<i32>} : memref<1x8x32xf32, #tpu.memory_space<vmem>>, vector<1x8x32xf32>,
    return
  }
  func.func @transform_0(%arg0: i32) -> (i32, i32, i32) {
    %c0_i32 = arith.constant 0 : i32
    %c0_i32_0 = arith.constant 0 : i32
    %c0_i32_1 = arith.constant 0 : i32
    return %arg0, %c0_i32, %c0_i32_0 : i32, i32, i32
  }
  func.func @transform_1(%arg0: i32) -> (i32, i32, i32) {
    %c0_i32 = arith.constant 0 : i32
    %c0_i32_0 = arith.constant 0 : i32
    %c0_i32_1 = arith.constant 0 : i32
    return %arg0, %c0_i32, %c0_i32_0 : i32, i32, i32
  }
  func.func @transform_2(%arg0: i32) -> (i32, i32) {
    %c0_i32 = arith.constant 0 : i32
    %c0_i32_0 = arith.constant 0 : i32
    %c0_i32_1 = arith.constant 0 : i32
    return %c0_i32, %c0_i32_0 : i32, i32
  }
  func.func @transform_3(%arg0: i32) -> (i32, i32) {
    %c0_i32 = arith.constant 0 : i32
    %c0_i32_0 = arith.constant 0 : i32
    %c0_i32_1 = arith.constant 0 : i32
    return %c0_i32, %c0_i32_0 : i32, i32
  }
  func.func @transform_4(%arg0: i32) -> (i32, i32) {
    %c0_i32 = arith.constant 0 : i32
    %c0_i32_0 = arith.constant 0 : i32
    %c0_i32_1 = arith.constant 0 : i32
    return %c0_i32, %c0_i32_0 : i32, i32
  }
  func.func @transform_5(%arg0: i32) -> (i32, i32) {
    %c0_i32 = arith.constant 0 : i32
    %c0_i32_0 = arith.constant 0 : i32
    %c0_i32_1 = arith.constant 0 : i32
    return %c0_i32, %c0_i32_0 : i32, i32
  }
  func.func @transform_6(%arg0: i32) -> (i32, i32) {
    %c0_i32 = arith.constant 0 : i32
    %c0_i32_0 = arith.constant 0 : i32
    %c0_i32_1 = arith.constant 0 : i32
    return %c0_i32, %c0_i32_0 : i32, i32
  }
  func.func @transform_7(%arg0: i32) -> (i32, i32, i32) {
    %c0_i32 = arith.constant 0 : i32
    %c0_i32_0 = arith.constant 0 : i32
    %c0_i32_1 = arith.constant 0 : i32
    return %arg0, %c0_i32, %c0_i32_0 : i32, i32, i32
  }
}

</mosaic_0001>

<llo_original>
// kernel: transformer_encoder_layer.1
$region0: #{transformer_encoder_layer.1}
  #allocation0 [shape = 'u32[]', space=smem, size = 0x4, offset = 0x4, fixed_abs, tag = 'smem constant byte address 0x4 - core index']
  #allocation1 [shape = 'u32[144,128]{1,0:T(1,128)}', space=vmem, size = 0x12000, scoped, tag = 'internal scratch']
  #allocation2 [shape = 'f32[8,96]{1,0:T(8,128)}', space=vmem, size = 0x1000, scoped, tag = 'scratch operand']
  %s0 = inlined_call_operand.vmem [shape: f32[2,8,32], index: 0, kind: input, shape index: {}]
  %s1 = inlined_call_operand.vmem [shape: f32[2,1,8], index: 1, kind: input, shape index: {}]
  %s2 = inlined_call_operand.vmem [shape: f32[32,96], index: 2, kind: input, shape index: {}]
  %s3 = inlined_call_operand.vmem [shape: f32[32,32], index: 3, kind: input, shape index: {}]
  %s4 = inlined_call_operand.vmem [shape: f32[32,64], index: 4, kind: input, shape index: {}]
  %s5 = inlined_call_operand.vmem [shape: f32[64,32], index: 5, kind: input, shape index: {}]
  %s6 = inlined_call_operand.vmem [shape: f32[8,96], index: 6, kind: input, shape index: {}]
  %s7 = inlined_call_operand.vmem [shape: f32[2,8,32], index: 7, kind: output, shape index: {}]
  %s8 = sld [smem:[#allocation0]]
  $region61: #{transformer_encoder_layer.1} parent=0
    _
  %s10 = ssub.s32 1, %s8
  %s11 = scalar_select 0, %s10, %s8
  loop: start=0, step=1, limit=4
  $region2: #{transformer_encoder_layer.1} parent=0 // loop_pre_header
    _
  $region3: #{transformer_encoder_layer.1} parent=0 // loop_header
    %s13 = sphi 0, %s17
    %p14 = scmp.ge.s32.totalorder %s13, 4
    %s23 = sphi 0, %s25
    %s26 = sphi 0, %s23
    %s27 = sphi 0, %s26
    %s43 = sphi 0, %s27
    %s49 = sphi 0, %s51
    %s52 = sphi 0, %s49
    %s53 = sphi 0, %s52
    %s69 = sphi 0, %s53
    %s73 = sphi 0, %s73
    %s75 = sphi 0, %s73
    %s76 = sphi 0, %s75
    %s90 = sphi 0, %s76
    %s94 = sphi 0, %s94
    %s96 = sphi 0, %s94
    %s97 = sphi 0, %s96
    %s111 = sphi 0, %s97
    %s115 = sphi 0, %s115
    %s117 = sphi 0, %s115
    %s118 = sphi 0, %s117
    %s132 = sphi 0, %s118
    %s136 = sphi 0, %s136
    %s138 = sphi 0, %s136
    %s139 = sphi 0, %s138
    %s153 = sphi 0, %s139
    %s157 = sphi 0, %s157
    %s159 = sphi 0, %s157
    %s160 = sphi 0, %s159
    %s174 = sphi 0, %s160
    %s180 = sphi 0, %s182
    %s183 = sphi 0, %s180
    %s184 = sphi 0, %s183
    %s200 = sphi 0, %s184
  $region4: #{transformer_encoder_layer.1} parent=0 // loop_header_branch
    %16 = sbr.rel (%p14) target = $region8
  $region5: #{transformer_encoder_layer.1} parent=0 // loop_body
    %s18 = ssub.s32 %s13, 1
    %s19 = ssub.s32 %s13, 2
    %s20 = sadd.s32 %s13, 1
    %s21 = ssub.s32 %s13, %s20
    %p22 = scmp.eq.s32.totalorder %s21, 0
    %s24 = sadd.s32 %s23, 1
    %s25 = scalar_select %p22, %s23, %s24
    %p28 = pneg %p22
    %p29 = scmp.eq.s32.totalorder %s13, 1
    %p30 = por %p28, %p29
    %p31 = scmp.ne.s32.totalorder %s23, %s26
    %p32 = scmp.eq.s32.totalorder %s13, 0
    %p33 = por %p31, %p32
    %p34 = scmp.ne.s32.totalorder %s23, %s26
    %p35 = scmp.eq.s32.totalorder %s18, 1
    %p36 = por %p34, %p35
    %p37 = scmp.ne.s32.totalorder %s26, %s27
    %p38 = scmp.eq.s32.totalorder %s18, 0
    %p39 = por %p37, %p38
    %p40 = scmp.ne.s32.totalorder %s26, %s27
    %p41 = scmp.eq.s32.totalorder %s19, 1
    %p42 = por %p40, %p41
    %p44 = scmp.ne.s32.totalorder %s27, %s43
    %p45 = scmp.eq.s32.totalorder %s19, 0
    %p46 = por %p44, %p45
    %s47 = ssub.s32 %s13, %s20
    %p48 = scmp.eq.s32.totalorder %s47, 0
    %s50 = sadd.s32 %s49, 1
    %s51 = scalar_select %p48, %s49, %s50
    %p54 = pneg %p48
    %p55 = scmp.eq.s32.totalorder %s13, 1
    %p56 = por %p54, %p55
    %p57 = scmp.ne.s32.totalorder %s49, %s52
    %p58 = scmp.eq.s32.totalorder %s13, 0
    %p59 = por %p57, %p58
    %p60 = scmp.ne.s32.totalorder %s49, %s52
    %p61 = scmp.eq.s32.totalorder %s18, 1
    %p62 = por %p60, %p61
    %p63 = scmp.ne.s32.totalorder %s52, %s53
    %p64 = scmp.eq.s32.totalorder %s18, 0
    %p65 = por %p63, %p64
    %p66 = scmp.ne.s32.totalorder %s52, %s53
    %p67 = scmp.eq.s32.totalorder %s19, 1
    %p68 = por %p66, %p67
    %p70 = scmp.ne.s32.totalorder %s53, %s69
    %p71 = scmp.eq.s32.totalorder %s19, 0
    %p72 = por %p70, %p71
    %s74 = sadd.s32 %s73, 1
    %p77 = scmp.eq.s32.totalorder %s13, 1
    %p78 = scmp.ne.s32.totalorder %s73, %s75
    %p79 = scmp.eq.s32.totalorder %s13, 0
    %p80 = por %p78, %p79
    %p81 = scmp.ne.s32.totalorder %s73, %s75
    %p82 = scmp.eq.s32.totalorder %s18, 1
    %p83 = por %p81, %p82
    %p84 = scmp.ne.s32.totalorder %s75, %s76
    %p85 = scmp.eq.s32.totalorder %s18, 0
    %p86 = por %p84, %p85
    %p87 = scmp.ne.s32.totalorder %s75, %s76
    %p88 = scmp.eq.s32.totalorder %s19, 1
    %p89 = por %p87, %p88
    %p91 = scmp.ne.s32.totalorder %s76, %s90
    %p92 = scmp.eq.s32.totalorder %s19, 0
    %p93 = por %p91, %p92
    %s95 = sadd.s32 %s94, 1
    %p98 = scmp.eq.s32.totalorder %s13, 1
    %p99 = scmp.ne.s32.totalorder %s94, %s96
    %p100 = scmp.eq.s32.totalorder %s13, 0
    %p101 = por %p99, %p100
    %p102 = scmp.ne.s32.totalorder %s94, %s96
    %p103 = scmp.eq.s32.totalorder %s18, 1
    %p104 = por %p102, %p103
    %p105 = scmp.ne.s32.totalorder %s96, %s97
    %p106 = scmp.eq.s32.totalorder %s18, 0
    %p107 = por %p105, %p106
    %p108 = scmp.ne.s32.totalorder %s96, %s97
    %p109 = scmp.eq.s32.totalorder %s19, 1
    %p110 = por %p108, %p109
    %p112 = scmp.ne.s32.totalorder %s97, %s111
    %p113 = scmp.eq.s32.totalorder %s19, 0
    %p114 = por %p112, %p113
    %s116 = sadd.s32 %s115, 1
    %p119 = scmp.eq.s32.totalorder %s13, 1
    %p120 = scmp.ne.s32.totalorder %s115, %s117
    %p121 = scmp.eq.s32.totalorder %s13, 0
    %p122 = por %p120, %p121
    %p123 = scmp.ne.s32.totalorder %s115, %s117
    %p124 = scmp.eq.s32.totalorder %s18, 1
    %p125 = por %p123, %p124
    %p126 = scmp.ne.s32.totalorder %s117, %s118
    %p127 = scmp.eq.s32.totalorder %s18, 0
    %p128 = por %p126, %p127
    %p129 = scmp.ne.s32.totalorder %s117, %s118
    %p130 = scmp.eq.s32.totalorder %s19, 1
    %p131 = por %p129, %p130
    %p133 = scmp.ne.s32.totalorder %s118, %s132
    %p134 = scmp.eq.s32.totalorder %s19, 0
    %p135 = por %p133, %p134
    %s137 = sadd.s32 %s136, 1
    %p140 = scmp.eq.s32.totalorder %s13, 1
    %p141 = scmp.ne.s32.totalorder %s136, %s138
    %p142 = scmp.eq.s32.totalorder %s13, 0
    %p143 = por %p141, %p142
    %p144 = scmp.ne.s32.totalorder %s136, %s138
    %p145 = scmp.eq.s32.totalorder %s18, 1
    %p146 = por %p144, %p145
    %p147 = scmp.ne.s32.totalorder %s138, %s139
    %p148 = scmp.eq.s32.totalorder %s18, 0
    %p149 = por %p147, %p148
    %p150 = scmp.ne.s32.totalorder %s138, %s139
    %p151 = scmp.eq.s32.totalorder %s19, 1
    %p152 = por %p150, %p151
    %p154 = scmp.ne.s32.totalorder %s139, %s153
    %p155 = scmp.eq.s32.totalorder %s19, 0
    %p156 = por %p154, %p155
    %s158 = sadd.s32 %s157, 1
    %p161 = scmp.eq.s32.totalorder %s13, 1
    %p162 = scmp.ne.s32.totalorder %s157, %s159
    %p163 = scmp.eq.s32.totalorder %s13, 0
    %p164 = por %p162, %p163
    %p165 = scmp.ne.s32.totalorder %s157, %s159
    %p166 = scmp.eq.s32.totalorder %s18, 1
    %p167 = por %p165, %p166
    %p168 = scmp.ne.s32.totalorder %s159, %s160
    %p169 = scmp.eq.s32.totalorder %s18, 0
    %p170 = por %p168, %p169
    %p171 = scmp.ne.s32.totalorder %s159, %s160
    %p172 = scmp.eq.s32.totalorder %s19, 1
    %p173 = por %p171, %p172
    %p175 = scmp.ne.s32.totalorder %s160, %s174
    %p176 = scmp.eq.s32.totalorder %s19, 0
    %p177 = por %p175, %p176
    %s178 = ssub.s32 %s13, %s20
    %p179 = scmp.eq.s32.totalorder %s178, 0
    %s181 = sadd.s32 %s180, 1
    %s182 = scalar_select %p179, %s180, %s181
    %p185 = pneg %p179
    %p186 = scmp.eq.s32.totalorder %s13, 1
    %p187 = por %p185, %p186
    %p188 = scmp.ne.s32.totalorder %s180, %s183
    %p189 = scmp.eq.s32.totalorder %s13, 0
    %p190 = por %p188, %p189
    %p191 = scmp.ne.s32.totalorder %s180, %s183
    %p192 = scmp.eq.s32.totalorder %s18, 1
    %p193 = por %p191, %p192
    %p194 = scmp.ne.s32.totalorder %s183, %s184
    %p195 = scmp.eq.s32.totalorder %s18, 0
    %p196 = por %p194, %p195
    %p197 = scmp.ne.s32.totalorder %s183, %s184
    %p198 = scmp.eq.s32.totalorder %s19, 1
    %p199 = por %p197, %p198
    %p201 = scmp.ne.s32.totalorder %s184, %s200
    %p202 = scmp.eq.s32.totalorder %s19, 0
    %p203 = por %p201, %p202
    %p204 = scmp.le.s32.totalorder 1, %s13
    %p205 = scmp.lt.s32.totalorder %s13, 3
    %p206 = pnand %p204, %p205
    %p207 = pneg %p206
    // Predicated region
    $region9: #{transformer_encoder_layer.1} parent=5 // pred_check
      _
    $region10: #{transformer_encoder_layer.1} parent=5 // pred_check_branch
      %209 = sbr.rel (%p206) target = $region12
    $region11: #{transformer_encoder_layer.1} parent=5 // pred_region
      %s210 = ssub.s32 %s13, 1
      // Predicated region
      $region13: #{transformer_encoder_layer.1} parent=11 // pred_check
        %p211 = pneg %p86
      $region14: #{transformer_encoder_layer.1} parent=11 // pred_check_branch
        %213 = sbr.rel (%p211) target = $region16
      $region15: #{transformer_encoder_layer.1} parent=11 // pred_region
        _
      $region16: #{transformer_encoder_layer.1} parent=11 // pred_fallthru
        _
      // Predicated region
      $region17: #{transformer_encoder_layer.1} parent=11 // pred_check
        %p214 = pneg %p107
      $region18: #{transformer_encoder_layer.1} parent=11 // pred_check_branch
        %216 = sbr.rel (%p214) target = $region20
      $region19: #{transformer_encoder_layer.1} parent=11 // pred_region
        _
      $region20: #{transformer_encoder_layer.1} parent=11 // pred_fallthru
        _
      // Predicated region
      $region21: #{transformer_encoder_layer.1} parent=11 // pred_check
        %p217 = pneg %p128
      $region22: #{transformer_encoder_layer.1} parent=11 // pred_check_branch
        %219 = sbr.rel (%p217) target = $region24
      $region23: #{transformer_encoder_layer.1} parent=11 // pred_region
        _
      $region24: #{transformer_encoder_layer.1} parent=11 // pred_fallthru
        _
      // Predicated region
      $region25: #{transformer_encoder_layer.1} parent=11 // pred_check
        %p220 = pneg %p149
      $region26: #{transformer_encoder_layer.1} parent=11 // pred_check_branch
        %222 = sbr.rel (%p220) target = $region28
      $region27: #{transformer_encoder_layer.1} parent=11 // pred_region
        _
      $region28: #{transformer_encoder_layer.1} parent=11 // pred_fallthru
        _
      // Predicated region
      $region29: #{transformer_encoder_layer.1} parent=11 // pred_check
        %p223 = pneg %p170
      $region30: #{transformer_encoder_layer.1} parent=11 // pred_check_branch
        %225 = sbr.rel (%p223) target = $region32
      $region31: #{transformer_encoder_layer.1} parent=11 // pred_region
        _
      $region32: #{transformer_encoder_layer.1} parent=11 // pred_fallthru
        _
    $region12: #{transformer_encoder_layer.1} parent=5 // pred_fallthru
      _
    %p226 = scmp.lt.s32.totalorder %s13, 2
    // Predicated region
    $region33: #{transformer_encoder_layer.1} parent=5 // pred_check
      %p227 = pneg %p226
    $region34: #{transformer_encoder_layer.1} parent=5 // pred_check_branch
      %229 = sbr.rel (%p227) target = $region36
    $region35: #{transformer_encoder_layer.1} parent=5 // pred_region
      // Predicated region
      $region37: #{transformer_encoder_layer.1} parent=35 // pred_check
        %p230 = pneg %p33
      $region38: #{transformer_encoder_layer.1} parent=35 // pred_check_branch
        %232 = sbr.rel (%p230) target = $region40
      $region39: #{transformer_encoder_layer.1} parent=35 // pred_region
        %p233 = scmp.lt.s32.totalorder %s13, 1
        %s234 = scalar_select %p233, %s13, 1
        %s235 = smul.addr %s234, 8
        %s236 = scalar_lea.vmem %s0, %s235
      $region40: #{transformer_encoder_layer.1} parent=35 // pred_fallthru
        _
      // Predicated region
      $region41: #{transformer_encoder_layer.1} parent=35 // pred_check
        %p237 = pneg %p59
      $region42: #{transformer_encoder_layer.1} parent=35 // pred_check_branch
        %239 = sbr.rel (%p237) target = $region44
      $region43: #{transformer_encoder_layer.1} parent=35 // pred_region
        %p240 = scmp.lt.s32.totalorder %s13, 1
        %s241 = scalar_select %p240, %s13, 1
        %s242 = scalar_lea.vmem %s1, %s241
      $region44: #{transformer_encoder_layer.1} parent=35 // pred_fallthru
        _
    $region36: #{transformer_encoder_layer.1} parent=5 // pred_fallthru
      _
    %p243 = scmp.le.s32.totalorder 1, %s13
    %p244 = scmp.lt.s32.totalorder %s13, 3
    %p245 = pnand %p243, %p244
    %p246 = pneg %p245
    // Predicated region
    $region45: #{transformer_encoder_layer.1} parent=5 // pred_check
      _
    $region46: #{transformer_encoder_layer.1} parent=5 // pred_check_branch
      %248 = sbr.rel (%p245) target = $region48
    $region47: #{transformer_encoder_layer.1} parent=5 // pred_region
      %s249 = ssub.s32 %s13, 1
      %p250 = scmp.lt.s32.totalorder %s18, 1
      %s251 = scalar_select %p250, %s18, 1
      %s252 = smul.addr %s251, 8
      %s253 = scalar_lea.vmem %s0, %s252
      %p254 = pneg %p39
      %p255 = pneg %p36
      %p256 = scmp.lt.s32.totalorder %s18, 1
      %s257 = scalar_select %p256, %s18, 1
      %s258 = scalar_lea.vmem %s1, %s257
      %p259 = pneg %p65
      %p260 = pneg %p62
      %p261 = pneg %p86
      %p262 = pneg %p83
      %p263 = pneg %p107
      %p264 = pneg %p104
      %p265 = pneg %p128
      %p266 = pneg %p125
      %p267 = pneg %p149
      %p268 = pneg %p146
      %p269 = pneg %p170
      %p270 = pneg %p167
      %p271 = pneg %p196
      %p272 = pneg %p193
      %p273 = scmp.lt.s32.totalorder %s18, 1
      %s274 = scalar_select %p273, %s18, 1
      %s275 = smul.addr %s274, 8
      %s276 = scalar_lea.vmem %s7, %s275
      %p277 = scmp.lt.s32.totalorder %s18, 1
      %s278 = scalar_select %p277, %s18, 1
      %s279 = smul.addr %s278, 8
      %s280 = scalar_lea.vmem %s0, %s279
      %p281 = scmp.lt.s32.totalorder %s18, 1
      %s282 = scalar_select %p281, %s18, 1
      %s283 = scalar_lea.vmem %s1, %s282
      %p284 = scmp.lt.s32.totalorder %s18, 1
      %s285 = scalar_select %p284, %s18, 1
      %s286 = smul.addr %s285, 8
      %s287 = scalar_lea.vmem %s7, %s286
      %v288 = vld [vmem:[%s280] sm:$0xff]
      %v289 = vld [vmem:[%s2] sm:$0xff]
      %v290 = vld [vmem:[%s2 + $0x8] sm:$0xff]
      %v291 = vld [vmem:[%s2 + $0x10] sm:$0xff]
      %v292 = vld [vmem:[%s2 + $0x18] sm:$0xff]
      %v293 = vld [vmem:[%s6] sm:$0x1]
      %v294 = vlaneseq
      %v295 = vshrl.u32 %v294, 7
      %v296 = vsub.s32 0, %v295
      %v297 = vrot.slane %v293, %v296
      %vm298 = vcmask 261120
      %v300 = vsel %vm298, %v288, 0
      %302 = vmatprep.subr.mxu0 0.0
      %303 = vmatpush1.msra.mxu0 0.0
      %304 = vmatprep.subr.mxu0 0.0
      %305 = vmatpush1.msra.mxu0 0.0
      %306 = vmatprep.subr.mxu0 0.0
      %307 = vmatpush1.msra.mxu0 0.0
      %308 = vmatprep.subr.mxu0 0.0
      %309 = vmatpush1.msra.mxu0 0.0
      %310 = vmatprep.subr.mxu0 0.0
      %311 = vmatpush1.msra.mxu0 0.0
      %312 = vmatprep.subr.mxu0 0.0
      %313 = vmatpush1.msra.mxu0 0.0
      %314 = vmatprep.subr.mxu0 0.0
      %315 = vmatpush1.msra.mxu0 0.0
      %316 = vmatprep.subr.mxu0 0.0
      %317 = vmatpush1.msra.mxu0 0.0
      %318 = vmatprep.subr.mxu0 0.0
      %319 = vmatpush1.msra.mxu0 0.0
      %320 = vmatprep.subr.mxu0 0.0
      %321 = vmatpush1.msra.mxu0 0.0
      %322 = vmatprep.subr.mxu0 0.0
      %323 = vmatpush1.msra.mxu0 0.0
      %324 = vmatprep.subr.mxu0 0.0
      %325 = vmatpush1.msra.mxu0 0.0
      %326 = vmatprep.subr.mxu0 0.0
      %327 = vmatpush1.msra.mxu0 %v292
      %328 = vmatprep.subr.mxu0 0.0
      %329 = vmatpush1.msra.mxu0 %v291
      %330 = vmatprep.subr.mxu0 0.0
      %331 = vmatpush1.msra.mxu0 %v290
      %332 = vmatprep.subr.mxu0 0.0
      %333 = vmatpush1.msra.mxu0 %v289
      %334 = vmatprep.subr.mxu0 0.0
      %335 = vmatpush2.msra.mxu0 0.0
      %336 = vmatprep.subr.mxu0 0.0
      %337 = vmatpush2.msra.mxu0 0.0
      %338 = vmatprep.subr.mxu0 0.0
      %339 = vmatpush2.msra.mxu0 0.0
      %340 = vmatprep.subr.mxu0 0.0
      %341 = vmatpush2.msra.mxu0 0.0
      %342 = vmatprep.subr.mxu0 0.0
      %343 = vmatpush2.msra.mxu0 0.0
      %344 = vmatprep.subr.mxu0 0.0
      %345 = vmatpush2.msra.mxu0 0.0
      %346 = vmatprep.subr.mxu0 0.0
      %347 = vmatpush2.msra.mxu0 0.0
      %348 = vmatprep.subr.mxu0 0.0
      %349 = vmatpush2.msra.mxu0 0.0
      %350 = vmatprep.subr.mxu0 0.0
      %351 = vmatpush2.msra.mxu0 0.0
      %352 = vmatprep.subr.mxu0 0.0
      %353 = vmatpush2.msra.mxu0 0.0
      %354 = vmatprep.subr.mxu0 0.0
      %355 = vmatpush2.msra.mxu0 0.0
      %356 = vmatprep.subr.mxu0 0.0
      %357 = vmatpush2.msra.mxu0 0.0
      %358 = vmatprep.subr.mxu0 0.0
      %359 = vmatpush2.msra.mxu0 0.0
      %360 = vmatprep.subr.mxu0 0.0
      %361 = vmatpush2.msra.mxu0 0.0
      %362 = vmatprep.subr.mxu0 0.0
      %363 = vmatpush2.msra.mxu0 0.0
      %364 = vmatprep.subr.mxu0 0.0
      %365 = vmatpush2.msra.mxu0 0.0
      %366 = vmatprep.mubr.f32.mxu0 0.0
      %367 = vmatmul.mubr.f32.gmra.mxu0 %v300
      %v368 = vpop.f32.mrf.mxu0
      %v369 = vadd.f32 %v297, %v368
      %v370 = vpop.f32.mrf.mxu0
      %371 = vdwg.mxu0
      %vm372 = vcmask 785408
      %373 = vst.msk [vmem:[#allocation2] sm:$0xff] %vm372, %v369
      %v374 = vld [vmem:[#allocation2] sm:$0xff]
      %376 = vrot.lane.b32.xlu0 %v374, 120
      %v377 = vpop.permute.xlu0 %376
      %378 = vrot.lane.b32.xlu0 %v374, 112
      %v379 = vpop.permute.xlu0 %378
      %380 = vrot.lane.b32.xlu0 %v374, 104
      %v381 = vpop.permute.xlu0 %380
      %v382 = vld [vmem:[%s283] sm:$0x1]
      %v384 = vlaneseq
      %v385 = vshrl.u32 %v384, 7
      %v386 = vsub.s32 0, %v385
      %v387 = vrot.slane %v382, %v386
      %389 = vrot.lane.b32.xlu0 %v374, 96
      %v390 = vpop.permute.xlu0 %389
      %vm391 = vcmask 64512
      %v392 = vsel %vm391, %v374, 0
      %v394 = vsel %vm391, %v390, 0
      %396 = vmatprep.subr.mxu0 0.0
      %397 = vmatpush1.xpose.msra.mxu0 0.0
      %398 = vmatprep.subr.mxu0 0.0
      %399 = vmatpush1.xpose.msra.mxu0 0.0
      %400 = vmatprep.subr.mxu0 0.0
      %401 = vmatpush1.xpose.msra.mxu0 0.0
      %402 = vmatprep.subr.mxu0 0.0
      %403 = vmatpush1.xpose.msra.mxu0 0.0
      %404 = vmatprep.subr.mxu0 0.0
      %405 = vmatpush1.xpose.msra.mxu0 0.0
      %406 = vmatprep.subr.mxu0 0.0
      %407 = vmatpush1.xpose.msra.mxu0 0.0
      %408 = vmatprep.subr.mxu0 0.0
      %409 = vmatpush1.xpose.msra.mxu0 0.0
      %410 = vmatprep.subr.mxu0 0.0
      %411 = vmatpush1.xpose.msra.mxu0 0.0
      %412 = vmatprep.subr.mxu0 0.0
      %413 = vmatpush1.xpose.msra.mxu0 0.0
      %414 = vmatprep.subr.mxu0 0.0
      %415 = vmatpush1.xpose.msra.mxu0 0.0
      %416 = vmatprep.subr.mxu0 0.0
      %417 = vmatpush1.xpose.msra.mxu0 0.0
      %418 = vmatprep.subr.mxu0 0.0
      %419 = vmatpush1.xpose.msra.mxu0 0.0
      %420 = vmatprep.subr.mxu0 0.0
      %421 = vmatpush1.xpose.msra.mxu0 0.0
      %422 = vmatprep.subr.mxu0 0.0
      %423 = vmatpush1.xpose.msra.mxu0 0.0
      %424 = vmatprep.subr.mxu0 0.0
      %425 = vmatpush1.xpose.msra.mxu0 0.0
      %426 = vmatprep.subr.mxu0 0.0
      %427 = vmatpush1.xpose.msra.mxu0 %v394
      %428 = vmatprep.subr.mxu0 0.0
      %429 = vmatpush2.xpose.msra.mxu0 0.0
      %430 = vmatprep.subr.mxu0 0.0
      %431 = vmatpush2.xpose.msra.mxu0 0.0
      %432 = vmatprep.subr.mxu0 0.0
      %433 = vmatpush2.xpose.msra.mxu0 0.0
      %434 = vmatprep.subr.mxu0 0.0
      %435 = vmatpush2.xpose.msra.mxu0 0.0
      %436 = vmatprep.subr.mxu0 0.0
      %437 = vmatpush2.xpose.msra.mxu0 0.0
      %438 = vmatprep.subr.mxu0 0.0
      %439 = vmatpush2.xpose.msra.mxu0 0.0
      %440 = vmatprep.subr.mxu0 0.0
      %441 = vmatpush2.xpose.msra.mxu0 0.0
      %442 = vmatprep.subr.mxu0 0.0
      %443 = vmatpush2.xpose.msra.mxu0 0.0
      %444 = vmatprep.subr.mxu0 0.0
      %445 = vmatpush2.xpose.msra.mxu0 0.0
      %446 = vmatprep.subr.mxu0 0.0
      %447 = vmatpush2.xpose.msra.mxu0 0.0
      %448 = vmatprep.subr.mxu0 0.0
      %449 = vmatpush2.xpose.msra.mxu0 0.0
      %450 = vmatprep.subr.mxu0 0.0
      %451 = vmatpush2.xpose.msra.mxu0 0.0
      %452 = vmatprep.subr.mxu0 0.0
      %453 = vmatpush2.xpose.msra.mxu0 0.0
      %454 = vmatprep.subr.mxu0 0.0
      %455 = vmatpush2.xpose.msra.mxu0 0.0
      %456 = vmatprep.subr.mxu0 0.0
      %457 = vmatpush2.xpose.msra.mxu0 0.0
      %458 = vmatprep.subr.mxu0 0.0
      %459 = vmatpush2.xpose.msra.mxu0 0.0
      %460 = vmatprep.mubr.f32.mxu0 0.0
      %461 = vmatmul.mubr.f32.gmra.mxu0 %v392
      %v462 = vpop.f32.mrf.mxu0
      %v463 = vadd.f32 %v387, %v462
      %v464 = vpop.f32.mrf.mxu0
      %465 = vdwg.mxu0
      %466 = vrot.lane.b32.xlu0 %v377, 96
      %v467 = vpop.permute.xlu0 %466
      %v468 = vsel %vm391, %v377, 0
      %v470 = vsel %vm391, %v467, 0
      %472 = vmatprep.subr.mxu0 0.0
      %473 = vmatpush1.xpose.msra.mxu0 0.0
      %474 = vmatprep.subr.mxu0 0.0
      %475 = vmatpush1.xpose.msra.mxu0 0.0
      %476 = vmatprep.subr.mxu0 0.0
      %477 = vmatpush1.xpose.msra.mxu0 0.0
      %478 = vmatprep.subr.mxu0 0.0
      %479 = vmatpush1.xpose.msra.mxu0 0.0
      %480 = vmatprep.subr.mxu0 0.0
      %481 = vmatpush1.xpose.msra.mxu0 0.0
      %482 = vmatprep.subr.mxu0 0.0
      %483 = vmatpush1.xpose.msra.mxu0 0.0
      %484 = vmatprep.subr.mxu0 0.0
      %485 = vmatpush1.xpose.msra.mxu0 0.0
      %486 = vmatprep.subr.mxu0 0.0
      %487 = vmatpush1.xpose.msra.mxu0 0.0
      %488 = vmatprep.subr.mxu0 0.0
      %489 = vmatpush1.xpose.msra.mxu0 0.0
      %490 = vmatprep.subr.mxu0 0.0
      %491 = vmatpush1.xpose.msra.mxu0 0.0
      %492 = vmatprep.subr.mxu0 0.0
      %493 = vmatpush1.xpose.msra.mxu0 0.0
      %494 = vmatprep.subr.mxu0 0.0
      %495 = vmatpush1.xpose.msra.mxu0 0.0
      %496 = vmatprep.subr.mxu0 0.0
      %497 = vmatpush1.xpose.msra.mxu0 0.0
      %498 = vmatprep.subr.mxu0 0.0
      %499 = vmatpush1.xpose.msra.mxu0 0.0
      %500 = vmatprep.subr.mxu0 0.0
      %501 = vmatpush1.xpose.msra.mxu0 0.0
      %502 = vmatprep.subr.mxu0 0.0
      %503 = vmatpush1.xpose.msra.mxu0 %v470
      %504 = vmatprep.subr.mxu0 0.0
      %505 = vmatpush2.xpose.msra.mxu0 0.0
      %506 = vmatprep.subr.mxu0 0.0
      %507 = vmatpush2.xpose.msra.mxu0 0.0
      %508 = vmatprep.subr.mxu0 0.0
      %509 = vmatpush2.xpose.msra.mxu0 0.0
      %510 = vmatprep.subr.mxu0 0.0
      %511 = vmatpush2.xpose.msra.mxu0 0.0
      %512 = vmatprep.subr.mxu0 0.0
      %513 = vmatpush2.xpose.msra.mxu0 0.0
      %514 = vmatprep.subr.mxu0 0.0
      %515 = vmatpush2.xpose.msra.mxu0 0.0
      %516 = vmatprep.subr.mxu0 0.0
      %517 = vmatpush2.xpose.msra.mxu0 0.0
      %518 = vmatprep.subr.mxu0 0.0
      %519 = vmatpush2.xpose.msra.mxu0 0.0
      %520 = vmatprep.subr.mxu0 0.0
      %521 = vmatpush2.xpose.msra.mxu0 0.0
      %522 = vmatprep.subr.mxu0 0.0
      %523 = vmatpush2.xpose.msra.mxu0 0.0
      %524 = vmatprep.subr.mxu0 0.0
      %525 = vmatpush2.xpose.msra.mxu0 0.0
      %526 = vmatprep.subr.mxu0 0.0
      %527 = vmatpush2.xpose.msra.mxu0 0.0
      %528 = vmatprep.subr.mxu0 0.0
      %529 = vmatpush2.xpose.msra.mxu0 0.0
      %530 = vmatprep.subr.mxu0 0.0
      %531 = vmatpush2.xpose.msra.mxu0 0.0
      %532 = vmatprep.subr.mxu0 0.0
      %533 = vmatpush2.xpose.msra.mxu0 0.0
      %534 = vmatprep.subr.mxu0 0.0
      %535 = vmatpush2.xpose.msra.mxu0 0.0
      %536 = vmatprep.mubr.f32.mxu0 0.0
      %537 = vmatmul.mubr.f32.gmra.mxu0 %v468
      %v538 = vpop.f32.mrf.mxu0
      %v539 = vadd.f32 %v387, %v538
      %v540 = vpop.f32.mrf.mxu0
      %541 = vdwg.mxu0
      %542 = vrot.lane.b32.xlu0 %v379, 96
      %v543 = vpop.permute.xlu0 %542
      %v544 = vsel %vm391, %v379, 0
      %v546 = vsel %vm391, %v543, 0
      %548 = vmatprep.subr.mxu0 0.0
      %549 = vmatpush1.xpose.msra.mxu0 0.0
      %550 = vmatprep.subr.mxu0 0.0
      %551 = vmatpush1.xpose.msra.mxu0 0.0
      %552 = vmatprep.subr.mxu0 0.0
      %553 = vmatpush1.xpose.msra.mxu0 0.0
      %554 = vmatprep.subr.mxu0 0.0
      %555 = vmatpush1.xpose.msra.mxu0 0.0
      %556 = vmatprep.subr.mxu0 0.0
      %557 = vmatpush1.xpose.msra.mxu0 0.0
      %558 = vmatprep.subr.mxu0 0.0
      %559 = vmatpush1.xpose.msra.mxu0 0.0
      %560 = vmatprep.subr.mxu0 0.0
      %561 = vmatpush1.xpose.msra.mxu0 0.0
      %562 = vmatprep.subr.mxu0 0.0
      %563 = vmatpush1.xpose.msra.mxu0 0.0
      %564 = vmatprep.subr.mxu0 0.0
      %565 = vmatpush1.xpose.msra.mxu0 0.0
      %566 = vmatprep.subr.mxu0 0.0
      %567 = vmatpush1.xpose.msra.mxu0 0.0
      %568 = vmatprep.subr.mxu0 0.0
      %569 = vmatpush1.xpose.msra.mxu0 0.0
      %570 = vmatprep.subr.mxu0 0.0
      %571 = vmatpush1.xpose.msra.mxu0 0.0
      %572 = vmatprep.subr.mxu0 0.0
      %573 = vmatpush1.xpose.msra.mxu0 0.0
      %574 = vmatprep.subr.mxu0 0.0
      %575 = vmatpush1.xpose.msra.mxu0 0.0
      %576 = vmatprep.subr.mxu0 0.0
      %577 = vmatpush1.xpose.msra.mxu0 0.0
      %578 = vmatprep.subr.mxu0 0.0
      %579 = vmatpush1.xpose.msra.mxu0 %v546
      %580 = vmatprep.subr.mxu0 0.0
      %581 = vmatpush2.xpose.msra.mxu0 0.0
      %582 = vmatprep.subr.mxu0 0.0
      %583 = vmatpush2.xpose.msra.mxu0 0.0
      %584 = vmatprep.subr.mxu0 0.0
      %585 = vmatpush2.xpose.msra.mxu0 0.0
      %586 = vmatprep.subr.mxu0 0.0
      %587 = vmatpush2.xpose.msra.mxu0 0.0
      %588 = vmatprep.subr.mxu0 0.0
      %589 = vmatpush2.xpose.msra.mxu0 0.0
      %590 = vmatprep.subr.mxu0 0.0
      %591 = vmatpush2.xpose.msra.mxu0 0.0
      %592 = vmatprep.subr.mxu0 0.0
      %593 = vmatpush2.xpose.msra.mxu0 0.0
      %594 = vmatprep.subr.mxu0 0.0
      %595 = vmatpush2.xpose.msra.mxu0 0.0
      %596 = vmatprep.subr.mxu0 0.0
      %597 = vmatpush2.xpose.msra.mxu0 0.0
      %598 = vmatprep.subr.mxu0 0.0
      %599 = vmatpush2.xpose.msra.mxu0 0.0
      %600 = vmatprep.subr.mxu0 0.0
      %601 = vmatpush2.xpose.msra.mxu0 0.0
      %602 = vmatprep.subr.mxu0 0.0
      %603 = vmatpush2.xpose.msra.mxu0 0.0
      %604 = vmatprep.subr.mxu0 0.0
      %605 = vmatpush2.xpose.msra.mxu0 0.0
      %606 = vmatprep.subr.mxu0 0.0
      %607 = vmatpush2.xpose.msra.mxu0 0.0
      %608 = vmatprep.subr.mxu0 0.0
      %609 = vmatpush2.xpose.msra.mxu0 0.0
      %610 = vmatprep.subr.mxu0 0.0
      %611 = vmatpush2.xpose.msra.mxu0 0.0
      %612 = vmatprep.mubr.f32.mxu0 0.0
      %613 = vmatmul.mubr.f32.gmra.mxu0 %v544
      %v614 = vpop.f32.mrf.mxu0
      %v615 = vadd.f32 %v387, %v614
      %v616 = vpop.f32.mrf.mxu0
      %617 = vdwg.mxu0
      %618 = vrot.lane.b32.xlu0 %v381, 96
      %v619 = vpop.permute.xlu0 %618
      %v620 = vsel %vm391, %v381, 0
      %v622 = vsel %vm391, %v619, 0
      %624 = vmatprep.subr.mxu0 0.0
      %625 = vmatpush1.xpose.msra.mxu0 0.0
      %626 = vmatprep.subr.mxu0 0.0
      %627 = vmatpush1.xpose.msra.mxu0 0.0
      %628 = vmatprep.subr.mxu0 0.0
      %629 = vmatpush1.xpose.msra.mxu0 0.0
      %630 = vmatprep.subr.mxu0 0.0
      %631 = vmatpush1.xpose.msra.mxu0 0.0
      %632 = vmatprep.subr.mxu0 0.0
      %633 = vmatpush1.xpose.msra.mxu0 0.0
      %634 = vmatprep.subr.mxu0 0.0
      %635 = vmatpush1.xpose.msra.mxu0 0.0
      %636 = vmatprep.subr.mxu0 0.0
      %637 = vmatpush1.xpose.msra.mxu0 0.0
      %638 = vmatprep.subr.mxu0 0.0
      %639 = vmatpush1.xpose.msra.mxu0 0.0
      %640 = vmatprep.subr.mxu0 0.0
      %641 = vmatpush1.xpose.msra.mxu0 0.0
      %642 = vmatprep.subr.mxu0 0.0
      %643 = vmatpush1.xpose.msra.mxu0 0.0
      %644 = vmatprep.subr.mxu0 0.0
      %645 = vmatpush1.xpose.msra.mxu0 0.0
      %646 = vmatprep.subr.mxu0 0.0
      %647 = vmatpush1.xpose.msra.mxu0 0.0
      %648 = vmatprep.subr.mxu0 0.0
      %649 = vmatpush1.xpose.msra.mxu0 0.0
      %650 = vmatprep.subr.mxu0 0.0
      %651 = vmatpush1.xpose.msra.mxu0 0.0
      %652 = vmatprep.subr.mxu0 0.0
      %653 = vmatpush1.xpose.msra.mxu0 0.0
      %654 = vmatprep.subr.mxu0 0.0
      %655 = vmatpush1.xpose.msra.mxu0 %v622
      %656 = vmatprep.subr.mxu0 0.0
      %657 = vmatpush2.xpose.msra.mxu0 0.0
      %658 = vmatprep.subr.mxu0 0.0
      %659 = vmatpush2.xpose.msra.mxu0 0.0
      %660 = vmatprep.subr.mxu0 0.0
      %661 = vmatpush2.xpose.msra.mxu0 0.0
      %662 = vmatprep.subr.mxu0 0.0
      %663 = vmatpush2.xpose.msra.mxu0 0.0
      %664 = vmatprep.subr.mxu0 0.0
      %665 = vmatpush2.xpose.msra.mxu0 0.0
      %666 = vmatprep.subr.mxu0 0.0
      %667 = vmatpush2.xpose.msra.mxu0 0.0
      %668 = vmatprep.subr.mxu0 0.0
      %669 = vmatpush2.xpose.msra.mxu0 0.0
      %670 = vmatprep.subr.mxu0 0.0
      %671 = vmatpush2.xpose.msra.mxu0 0.0
      %672 = vmatprep.subr.mxu0 0.0
      %673 = vmatpush2.xpose.msra.mxu0 0.0
      %674 = vmatprep.subr.mxu0 0.0
      %675 = vmatpush2.xpose.msra.mxu0 0.0
      %676 = vmatprep.subr.mxu0 0.0
      %677 = vmatpush2.xpose.msra.mxu0 0.0
      %678 = vmatprep.subr.mxu0 0.0
      %679 = vmatpush2.xpose.msra.mxu0 0.0
      %680 = vmatprep.subr.mxu0 0.0
      %681 = vmatpush2.xpose.msra.mxu0 0.0
      %682 = vmatprep.subr.mxu0 0.0
      %683 = vmatpush2.xpose.msra.mxu0 0.0
      %684 = vmatprep.subr.mxu0 0.0
      %685 = vmatpush2.xpose.msra.mxu0 0.0
      %686 = vmatprep.subr.mxu0 0.0
      %687 = vmatpush2.xpose.msra.mxu0 0.0
      %688 = vmatprep.mubr.f32.mxu0 0.0
      %689 = vmatmul.mubr.f32.gmra.mxu0 %v620
      %v690 = vpop.f32.mrf.mxu0
      %v691 = vadd.f32 %v387, %v690
      %v692 = vpop.f32.mrf.mxu0
      %693 = vdwg.mxu0
      %v694 = vsel %vm391, %v463, -inf
      %695 = vmax.xlane.f32.xlu0 %v694
      %v696 = vpop.xlane.xlu0 %695
      %v697 = vsel %vm391, %v539, -inf
      %698 = vmax.xlane.f32.xlu0 %v697
      %v699 = vpop.xlane.xlu0 %698
      %v700 = vsel %vm391, %v615, -inf
      %701 = vmax.xlane.f32.xlu0 %v700
      %v702 = vpop.xlane.xlu0 %701
      %v703 = vsel %vm391, %v691, -inf
      %704 = vmax.xlane.f32.xlu0 %v703
      %v705 = vpop.xlane.xlu0 %704
      %v706 = vsub.f32 %v463, %v696
      %v707 = vsub.f32 %v539, %v699
      %v708 = vsub.f32 %v615, %v702
      %v709 = vsub.f32 %v691, %v705
      %v710 = vmul.f32 %v706, 1.442695
      %v711 = vpow.pop %v710
      %v712 = vmul.f32 %v707, 1.442695
      %v713 = vpow.pop %v712
      %v714 = vmul.f32 %v708, 1.442695
      %v715 = vpow.pop %v714
      %v716 = vmul.f32 %v709, 1.442695
      %v717 = vpow.pop %v716
      %v718 = vsel %vm391, %v711, 0.0
      %719 = vadd.xlane.f32.xlu0 %v718
      %v720 = vpop.xlane.xlu0 %719
      %v721 = vsel %vm391, %v713, 0.0
      %722 = vadd.xlane.f32.xlu0 %v721
      %v723 = vpop.xlane.xlu0 %722
      %v724 = vsel %vm391, %v715, 0.0
      %725 = vadd.xlane.f32.xlu0 %v724
      %v726 = vpop.xlane.xlu0 %725
      %v727 = vsel %vm391, %v717, 0.0
      %728 = vadd.xlane.f32.xlu0 %v727
      %v729 = vpop.xlane.xlu0 %728
      %v730 = vrcp.pop %v720
      %v731 = vrcp.pop %v723
      %v732 = vrcp.pop %v726
      %v733 = vrcp.pop %v729
      %v734 = vmul.f32 %v711, %v730
      %v735 = vmul.f32 %v713, %v731
      %v736 = vmul.f32 %v715, %v732
      %v737 = vmul.f32 %v717, %v733
      %738 = vrot.lane.b32.xlu0 %v374, 64
      %v739 = vpop.permute.xlu0 %738
      %v742 = vsel %vm391, %v734, 0
      %744 = vmatprep.subr.mxu0 0.0
      %745 = vmatpush1.msra.mxu0 0.0
      %746 = vmatprep.subr.mxu0 0.0
      %747 = vmatpush1.msra.mxu0 0.0
      %748 = vmatprep.subr.mxu0 0.0
      %749 = vmatpush1.msra.mxu0 0.0
      %750 = vmatprep.subr.mxu0 0.0
      %751 = vmatpush1.msra.mxu0 0.0
      %752 = vmatprep.subr.mxu0 0.0
      %753 = vmatpush1.msra.mxu0 0.0
      %754 = vmatprep.subr.mxu0 0.0
      %755 = vmatpush1.msra.mxu0 0.0
      %756 = vmatprep.subr.mxu0 0.0
      %757 = vmatpush1.msra.mxu0 0.0
      %758 = vmatprep.subr.mxu0 0.0
      %759 = vmatpush1.msra.mxu0 0.0
      %760 = vmatprep.subr.mxu0 0.0
      %761 = vmatpush1.msra.mxu0 0.0
      %762 = vmatprep.subr.mxu0 0.0
      %763 = vmatpush1.msra.mxu0 0.0
      %764 = vmatprep.subr.mxu0 0.0
      %765 = vmatpush1.msra.mxu0 0.0
      %766 = vmatprep.subr.mxu0 0.0
      %767 = vmatpush1.msra.mxu0 0.0
      %768 = vmatprep.subr.mxu0 0.0
      %769 = vmatpush1.msra.mxu0 0.0
      %770 = vmatprep.subr.mxu0 0.0
      %771 = vmatpush1.msra.mxu0 0.0
      %772 = vmatprep.subr.mxu0 0.0
      %773 = vmatpush1.msra.mxu0 0.0
      %774 = vmatprep.subr.mxu0 0.0
      %775 = vmatpush1.msra.mxu0 %v739
      %776 = vmatprep.subr.mxu0 0.0
      %777 = vmatpush2.msra.mxu0 0.0
      %778 = vmatprep.subr.mxu0 0.0
      %779 = vmatpush2.msra.mxu0 0.0
      %780 = vmatprep.subr.mxu0 0.0
      %781 = vmatpush2.msra.mxu0 0.0
      %782 = vmatprep.subr.mxu0 0.0
      %783 = vmatpush2.msra.mxu0 0.0
      %784 = vmatprep.subr.mxu0 0.0
      %785 = vmatpush2.msra.mxu0 0.0
      %786 = vmatprep.subr.mxu0 0.0
      %787 = vmatpush2.msra.mxu0 0.0
      %788 = vmatprep.subr.mxu0 0.0
      %789 = vmatpush2.msra.mxu0 0.0
      %790 = vmatprep.subr.mxu0 0.0
      %791 = vmatpush2.msra.mxu0 0.0
      %792 = vmatprep.subr.mxu0 0.0
      %793 = vmatpush2.msra.mxu0 0.0
      %794 = vmatprep.subr.mxu0 0.0
      %795 = vmatpush2.msra.mxu0 0.0
      %796 = vmatprep.subr.mxu0 0.0
      %797 = vmatpush2.msra.mxu0 0.0
      %798 = vmatprep.subr.mxu0 0.0
      %799 = vmatpush2.msra.mxu0 0.0
      %800 = vmatprep.subr.mxu0 0.0
      %801 = vmatpush2.msra.mxu0 0.0
      %802 = vmatprep.subr.mxu0 0.0
      %803 = vmatpush2.msra.mxu0 0.0
      %804 = vmatprep.subr.mxu0 0.0
      %805 = vmatpush2.msra.mxu0 0.0
      %806 = vmatprep.subr.mxu0 0.0
      %807 = vmatpush2.msra.mxu0 0.0
      %808 = vmatprep.mubr.f32.mxu0 0.0
      %809 = vmatmul.mubr.f32.gmra.mxu0 %v742
      %v810 = vpop.f32.mrf.mxu0
      %v811 = vadd.f32 0.0, %v810
      %v812 = vpop.f32.mrf.mxu0
      %813 = vdwg.mxu0
      %814 = vrot.lane.b32.xlu0 %v377, 64
      %v815 = vpop.permute.xlu0 %814
      %v818 = vsel %vm391, %v735, 0
      %820 = vmatprep.subr.mxu0 0.0
      %821 = vmatpush1.msra.mxu0 0.0
      %822 = vmatprep.subr.mxu0 0.0
      %823 = vmatpush1.msra.mxu0 0.0
      %824 = vmatprep.subr.mxu0 0.0
      %825 = vmatpush1.msra.mxu0 0.0
      %826 = vmatprep.subr.mxu0 0.0
      %827 = vmatpush1.msra.mxu0 0.0
      %828 = vmatprep.subr.mxu0 0.0
      %829 = vmatpush1.msra.mxu0 0.0
      %830 = vmatprep.subr.mxu0 0.0
      %831 = vmatpush1.msra.mxu0 0.0
      %832 = vmatprep.subr.mxu0 0.0
      %833 = vmatpush1.msra.mxu0 0.0
      %834 = vmatprep.subr.mxu0 0.0
      %835 = vmatpush1.msra.mxu0 0.0
      %836 = vmatprep.subr.mxu0 0.0
      %837 = vmatpush1.msra.mxu0 0.0
      %838 = vmatprep.subr.mxu0 0.0
      %839 = vmatpush1.msra.mxu0 0.0
      %840 = vmatprep.subr.mxu0 0.0
      %841 = vmatpush1.msra.mxu0 0.0
      %842 = vmatprep.subr.mxu0 0.0
      %843 = vmatpush1.msra.mxu0 0.0
      %844 = vmatprep.subr.mxu0 0.0
      %845 = vmatpush1.msra.mxu0 0.0
      %846 = vmatprep.subr.mxu0 0.0
      %847 = vmatpush1.msra.mxu0 0.0
      %848 = vmatprep.subr.mxu0 0.0
      %849 = vmatpush1.msra.mxu0 0.0
      %850 = vmatprep.subr.mxu0 0.0
      %851 = vmatpush1.msra.mxu0 %v815
      %852 = vmatprep.subr.mxu0 0.0
      %853 = vmatpush2.msra.mxu0 0.0
      %854 = vmatprep.subr.mxu0 0.0
      %855 = vmatpush2.msra.mxu0 0.0
      %856 = vmatprep.subr.mxu0 0.0
      %857 = vmatpush2.msra.mxu0 0.0
      %858 = vmatprep.subr.mxu0 0.0
      %859 = vmatpush2.msra.mxu0 0.0
      %860 = vmatprep.subr.mxu0 0.0
      %861 = vmatpush2.msra.mxu0 0.0
      %862 = vmatprep.subr.mxu0 0.0
      %863 = vmatpush2.msra.mxu0 0.0
      %864 = vmatprep.subr.mxu0 0.0
      %865 = vmatpush2.msra.mxu0 0.0
      %866 = vmatprep.subr.mxu0 0.0
      %867 = vmatpush2.msra.mxu0 0.0
      %868 = vmatprep.subr.mxu0 0.0
      %869 = vmatpush2.msra.mxu0 0.0
      %870 = vmatprep.subr.mxu0 0.0
      %871 = vmatpush2.msra.mxu0 0.0
      %872 = vmatprep.subr.mxu0 0.0
      %873 = vmatpush2.msra.mxu0 0.0
      %874 = vmatprep.subr.mxu0 0.0
      %875 = vmatpush2.msra.mxu0 0.0
      %876 = vmatprep.subr.mxu0 0.0
      %877 = vmatpush2.msra.mxu0 0.0
      %878 = vmatprep.subr.mxu0 0.0
      %879 = vmatpush2.msra.mxu0 0.0
      %880 = vmatprep.subr.mxu0 0.0
      %881 = vmatpush2.msra.mxu0 0.0
      %882 = vmatprep.subr.mxu0 0.0
      %883 = vmatpush2.msra.mxu0 0.0
      %884 = vmatprep.mubr.f32.mxu0 0.0
      %885 = vmatmul.mubr.f32.gmra.mxu0 %v818
      %v886 = vpop.f32.mrf.mxu0
      %v887 = vadd.f32 0.0, %v886
      %v888 = vpop.f32.mrf.mxu0
      %889 = vdwg.mxu0
      %890 = vrot.lane.b32.xlu0 %v379, 64
      %v891 = vpop.permute.xlu0 %890
      %v894 = vsel %vm391, %v736, 0
      %896 = vmatprep.subr.mxu0 0.0
      %897 = vmatpush1.msra.mxu0 0.0
      %898 = vmatprep.subr.mxu0 0.0
      %899 = vmatpush1.msra.mxu0 0.0
      %900 = vmatprep.subr.mxu0 0.0
      %901 = vmatpush1.msra.mxu0 0.0
      %902 = vmatprep.subr.mxu0 0.0
      %903 = vmatpush1.msra.mxu0 0.0
      %904 = vmatprep.subr.mxu0 0.0
      %905 = vmatpush1.msra.mxu0 0.0
      %906 = vmatprep.subr.mxu0 0.0
      %907 = vmatpush1.msra.mxu0 0.0
      %908 = vmatprep.subr.mxu0 0.0
      %909 = vmatpush1.msra.mxu0 0.0
      %910 = vmatprep.subr.mxu0 0.0
      %911 = vmatpush1.msra.mxu0 0.0
      %912 = vmatprep.subr.mxu0 0.0
      %913 = vmatpush1.msra.mxu0 0.0
      %914 = vmatprep.subr.mxu0 0.0
      %915 = vmatpush1.msra.mxu0 0.0
      %916 = vmatprep.subr.mxu0 0.0
      %917 = vmatpush1.msra.mxu0 0.0
      %918 = vmatprep.subr.mxu0 0.0
      %919 = vmatpush1.msra.mxu0 0.0
      %920 = vmatprep.subr.mxu0 0.0
      %921 = vmatpush1.msra.mxu0 0.0
      %922 = vmatprep.subr.mxu0 0.0
      %923 = vmatpush1.msra.mxu0 0.0
      %924 = vmatprep.subr.mxu0 0.0
      %925 = vmatpush1.msra.mxu0 0.0
      %926 = vmatprep.subr.mxu0 0.0
      %927 = vmatpush1.msra.mxu0 %v891
      %928 = vmatprep.subr.mxu0 0.0
      %929 = vmatpush2.msra.mxu0 0.0
      %930 = vmatprep.subr.mxu0 0.0
      %931 = vmatpush2.msra.mxu0 0.0
      %932 = vmatprep.subr.mxu0 0.0
      %933 = vmatpush2.msra.mxu0 0.0
      %934 = vmatprep.subr.mxu0 0.0
      %935 = vmatpush2.msra.mxu0 0.0
      %936 = vmatprep.subr.mxu0 0.0
      %937 = vmatpush2.msra.mxu0 0.0
      %938 = vmatprep.subr.mxu0 0.0
      %939 = vmatpush2.msra.mxu0 0.0
      %940 = vmatprep.subr.mxu0 0.0
      %941 = vmatpush2.msra.mxu0 0.0
      %942 = vmatprep.subr.mxu0 0.0
      %943 = vmatpush2.msra.mxu0 0.0
      %944 = vmatprep.subr.mxu0 0.0
      %945 = vmatpush2.msra.mxu0 0.0
      %946 = vmatprep.subr.mxu0 0.0
      %947 = vmatpush2.msra.mxu0 0.0
      %948 = vmatprep.subr.mxu0 0.0
      %949 = vmatpush2.msra.mxu0 0.0
      %950 = vmatprep.subr.mxu0 0.0
      %951 = vmatpush2.msra.mxu0 0.0
      %952 = vmatprep.subr.mxu0 0.0
      %953 = vmatpush2.msra.mxu0 0.0
      %954 = vmatprep.subr.mxu0 0.0
      %955 = vmatpush2.msra.mxu0 0.0
      %956 = vmatprep.subr.mxu0 0.0
      %957 = vmatpush2.msra.mxu0 0.0
      %958 = vmatprep.subr.mxu0 0.0
      %959 = vmatpush2.msra.mxu0 0.0
      %960 = vmatprep.mubr.f32.mxu0 0.0
      %961 = vmatmul.mubr.f32.gmra.mxu0 %v894
      %v962 = vpop.f32.mrf.mxu0
      %v963 = vadd.f32 0.0, %v962
      %v964 = vpop.f32.mrf.mxu0
      %965 = vdwg.mxu0
      %966 = vrot.lane.b32.xlu0 %v381, 64
      %v967 = vpop.permute.xlu0 %966
      %v970 = vsel %vm391, %v737, 0
      %972 = vmatprep.subr.mxu0 0.0
      %973 = vmatpush1.msra.mxu0 0.0
      %974 = vmatprep.subr.mxu0 0.0
      %975 = vmatpush1.msra.mxu0 0.0
      %976 = vmatprep.subr.mxu0 0.0
      %977 = vmatpush1.msra.mxu0 0.0
      %978 = vmatprep.subr.mxu0 0.0
      %979 = vmatpush1.msra.mxu0 0.0
      %980 = vmatprep.subr.mxu0 0.0
      %981 = vmatpush1.msra.mxu0 0.0
      %982 = vmatprep.subr.mxu0 0.0
      %983 = vmatpush1.msra.mxu0 0.0
      %984 = vmatprep.subr.mxu0 0.0
      %985 = vmatpush1.msra.mxu0 0.0
      %986 = vmatprep.subr.mxu0 0.0
      %987 = vmatpush1.msra.mxu0 0.0
      %988 = vmatprep.subr.mxu0 0.0
      %989 = vmatpush1.msra.mxu0 0.0
      %990 = vmatprep.subr.mxu0 0.0
      %991 = vmatpush1.msra.mxu0 0.0
      %992 = vmatprep.subr.mxu0 0.0
      %993 = vmatpush1.msra.mxu0 0.0
      %994 = vmatprep.subr.mxu0 0.0
      %995 = vmatpush1.msra.mxu0 0.0
      %996 = vmatprep.subr.mxu0 0.0
      %997 = vmatpush1.msra.mxu0 0.0
      %998 = vmatprep.subr.mxu0 0.0
      %999 = vmatpush1.msra.mxu0 0.0
      %1000 = vmatprep.subr.mxu0 0.0
      %1001 = vmatpush1.msra.mxu0 0.0
      %1002 = vmatprep.subr.mxu0 0.0
      %1003 = vmatpush1.msra.mxu0 %v967
      %1004 = vmatprep.subr.mxu0 0.0
      %1005 = vmatpush2.msra.mxu0 0.0
      %1006 = vmatprep.subr.mxu0 0.0
      %1007 = vmatpush2.msra.mxu0 0.0
      %1008 = vmatprep.subr.mxu0 0.0
      %1009 = vmatpush2.msra.mxu0 0.0
      %1010 = vmatprep.subr.mxu0 0.0
      %1011 = vmatpush2.msra.mxu0 0.0
      %1012 = vmatprep.subr.mxu0 0.0
      %1013 = vmatpush2.msra.mxu0 0.0
      %1014 = vmatprep.subr.mxu0 0.0
      %1015 = vmatpush2.msra.mxu0 0.0
      %1016 = vmatprep.subr.mxu0 0.0
      %1017 = vmatpush2.msra.mxu0 0.0
      %1018 = vmatprep.subr.mxu0 0.0
      %1019 = vmatpush2.msra.mxu0 0.0
      %1020 = vmatprep.subr.mxu0 0.0
      %1021 = vmatpush2.msra.mxu0 0.0
      %1022 = vmatprep.subr.mxu0 0.0
      %1023 = vmatpush2.msra.mxu0 0.0
      %1024 = vmatprep.subr.mxu0 0.0
      %1025 = vmatpush2.msra.mxu0 0.0
      %1026 = vmatprep.subr.mxu0 0.0
      %1027 = vmatpush2.msra.mxu0 0.0
      %1028 = vmatprep.subr.mxu0 0.0
      %1029 = vmatpush2.msra.mxu0 0.0
      %1030 = vmatprep.subr.mxu0 0.0
      %1031 = vmatpush2.msra.mxu0 0.0
      %1032 = vmatprep.subr.mxu0 0.0
      %1033 = vmatpush2.msra.mxu0 0.0
      %1034 = vmatprep.subr.mxu0 0.0
      %1035 = vmatpush2.msra.mxu0 0.0
      %1036 = vmatprep.mubr.f32.mxu0 0.0
      %1037 = vmatmul.mubr.f32.gmra.mxu0 %v970
      %v1038 = vpop.f32.mrf.mxu0
      %v1039 = vadd.f32 0.0, %v1038
      %v1040 = vpop.f32.mrf.mxu0
      %1041 = vdwg.mxu0
      %1042 = vst.msk [vmem:[#allocation2] sm:$0xff] %vm391, %v811
      %1044 = vrot.lane.b32.xlu0 %v887, 8
      %v1045 = vpop.permute.xlu0 %1044
      %vm1047 = vcmask 130112
      %1048 = vst.msk [vmem:[#allocation2] sm:$0xff] %vm1047, %v1045
      %1050 = vrot.lane.b32.xlu0 %v963, 16
      %v1051 = vpop.permute.xlu0 %1050
      %vm1053 = vcmask 195712
      %1054 = vst.msk [vmem:[#allocation2] sm:$0xff] %vm1053, %v1051
      %1056 = vrot.lane.b32.xlu0 %v1039, 24
      %v1057 = vpop.permute.xlu0 %1056
      %vm1059 = vcmask 261312
      %1060 = vst.msk [vmem:[#allocation2] sm:$0xff] %vm1059, %v1057
      %v1061 = vld [vmem:[#allocation2] sm:$0xff]
      %v1062 = vld [vmem:[%s3] sm:$0xff]
      %v1063 = vld [vmem:[%s3 + $0x8] sm:$0xff]
      %v1064 = vld [vmem:[%s3 + $0x10] sm:$0xff]
      %v1065 = vld [vmem:[%s3 + $0x18] sm:$0xff]
      %v1066 = vld [vmem:[%s6 + $0x1] sm:$0x1]
      %v1067 = vlaneseq
      %v1068 = vshrl.u32 %v1067, 7
      %v1069 = vsub.s32 0, %v1068
      %v1070 = vrot.slane %v1066, %v1069
      %v1072 = vsel %vm298, %v1061, 0
      %1074 = vmatprep.subr.mxu0 0.0
      %1075 = vmatpush1.msra.mxu0 0.0
      %1076 = vmatprep.subr.mxu0 0.0
      %1077 = vmatpush1.msra.mxu0 0.0
      %1078 = vmatprep.subr.mxu0 0.0
      %1079 = vmatpush1.msra.mxu0 0.0
      %1080 = vmatprep.subr.mxu0 0.0
      %1081 = vmatpush1.msra.mxu0 0.0
      %1082 = vmatprep.subr.mxu0 0.0
      %1083 = vmatpush1.msra.mxu0 0.0
      %1084 = vmatprep.subr.mxu0 0.0
      %1085 = vmatpush1.msra.mxu0 0.0
      %1086 = vmatprep.subr.mxu0 0.0
      %1087 = vmatpush1.msra.mxu0 0.0
      %1088 = vmatprep.subr.mxu0 0.0
      %1089 = vmatpush1.msra.mxu0 0.0
      %1090 = vmatprep.subr.mxu0 0.0
      %1091 = vmatpush1.msra.mxu0 0.0
      %1092 = vmatprep.subr.mxu0 0.0
      %1093 = vmatpush1.msra.mxu0 0.0
      %1094 = vmatprep.subr.mxu0 0.0
      %1095 = vmatpush1.msra.mxu0 0.0
      %1096 = vmatprep.subr.mxu0 0.0
      %1097 = vmatpush1.msra.mxu0 0.0
      %1098 = vmatprep.subr.mxu0 0.0
      %1099 = vmatpush1.msra.mxu0 %v1065
      %1100 = vmatprep.subr.mxu0 0.0
      %1101 = vmatpush1.msra.mxu0 %v1064
      %1102 = vmatprep.subr.mxu0 0.0
      %1103 = vmatpush1.msra.mxu0 %v1063
      %1104 = vmatprep.subr.mxu0 0.0
      %1105 = vmatpush1.msra.mxu0 %v1062
      %1106 = vmatprep.subr.mxu0 0.0
      %1107 = vmatpush2.msra.mxu0 0.0
      %1108 = vmatprep.subr.mxu0 0.0
      %1109 = vmatpush2.msra.mxu0 0.0
      %1110 = vmatprep.subr.mxu0 0.0
      %1111 = vmatpush2.msra.mxu0 0.0
      %1112 = vmatprep.subr.mxu0 0.0
      %1113 = vmatpush2.msra.mxu0 0.0
      %1114 = vmatprep.subr.mxu0 0.0
      %1115 = vmatpush2.msra.mxu0 0.0
      %1116 = vmatprep.subr.mxu0 0.0
      %1117 = vmatpush2.msra.mxu0 0.0
      %1118 = vmatprep.subr.mxu0 0.0
      %1119 = vmatpush2.msra.mxu0 0.0
      %1120 = vmatprep.subr.mxu0 0.0
      %1121 = vmatpush2.msra.mxu0 0.0
      %1122 = vmatprep.subr.mxu0 0.0
      %1123 = vmatpush2.msra.mxu0 0.0
      %1124 = vmatprep.subr.mxu0 0.0
      %1125 = vmatpush2.msra.mxu0 0.0
      %1126 = vmatprep.subr.mxu0 0.0
      %1127 = vmatpush2.msra.mxu0 0.0
      %1128 = vmatprep.subr.mxu0 0.0
      %1129 = vmatpush2.msra.mxu0 0.0
      %1130 = vmatprep.subr.mxu0 0.0
      %1131 = vmatpush2.msra.mxu0 0.0
      %1132 = vmatprep.subr.mxu0 0.0
      %1133 = vmatpush2.msra.mxu0 0.0
      %1134 = vmatprep.subr.mxu0 0.0
      %1135 = vmatpush2.msra.mxu0 0.0
      %1136 = vmatprep.subr.mxu0 0.0
      %1137 = vmatpush2.msra.mxu0 0.0
      %1138 = vmatprep.mubr.f32.mxu0 0.0
      %1139 = vmatmul.mubr.f32.gmra.mxu0 %v1072
      %v1140 = vpop.f32.mrf.mxu0
      %v1141 = vadd.f32 %v1070, %v1140
      %v1142 = vpop.f32.mrf.mxu0
      %1143 = vdwg.mxu0
      %v1144 = vadd.f32 %v288, %v1141
      %v1145 = vsel %vm298, %v1144, 0.0
      %1146 = vadd.xlane.f32.xlu0 %v1145
      %v1147 = vpop.xlane.xlu0 %1146
      %v1148 = vrcp.pop 32.0
      %v1149 = vmul.f32 %v1147, %v1148
      %v1150 = vmul.f32 %v1144, %v1144
      %v1151 = vsel %vm298, %v1150, 0.0
      %1152 = vadd.xlane.f32.xlu0 %v1151
      %v1153 = vpop.xlane.xlu0 %1152
      %v1154 = vmul.f32 %v1153, %v1148
      %v1155 = vsub.f32 %v1144, %v1149
      %v1156 = vmul.f32 %v1149, %v1149
      %v1157 = vsub.f32 %v1154, %v1156
      %v1158 = vadd.f32 %v1157, 1e-05
      %v1159 = vrsqrt.pop %v1158
      %v1160 = vmul.f32 %v1155, %v1159
      %v1161 = vld [vmem:[%s6 + $0x4] sm:$0x1]
      %v1162 = vlaneseq
      %v1163 = vshrl.u32 %v1162, 7
      %v1164 = vsub.s32 0, %v1163
      %v1165 = vrot.slane %v1161, %v1164
      %v1166 = vmul.f32 %v1160, %v1165
      %v1167 = vld [vmem:[%s6 + $0x5] sm:$0x1]
      %v1168 = vlaneseq
      %v1169 = vshrl.u32 %v1168, 7
      %v1170 = vsub.s32 0, %v1169
      %v1171 = vrot.slane %v1167, %v1170
      %v1172 = vadd.f32 %v1166, %v1171
      %v1173 = vld [vmem:[%s4] sm:$0xff]
      %v1174 = vld [vmem:[%s4 + $0x8] sm:$0xff]
      %v1175 = vld [vmem:[%s4 + $0x10] sm:$0xff]
      %v1176 = vld [vmem:[%s4 + $0x18] sm:$0xff]
      %v1177 = vld [vmem:[%s6 + $0x2] sm:$0x1]
      %v1178 = vlaneseq
      %v1179 = vshrl.u32 %v1178, 7
      %v1180 = vsub.s32 0, %v1179
      %v1181 = vrot.slane %v1177, %v1180
      %v1183 = vsel %vm298, %v1172, 0
      %1185 = vmatprep.subr.mxu0 0.0
      %1186 = vmatpush1.msra.mxu0 0.0
      %1187 = vmatprep.subr.mxu0 0.0
      %1188 = vmatpush1.msra.mxu0 0.0
      %1189 = vmatprep.subr.mxu0 0.0
      %1190 = vmatpush1.msra.mxu0 0.0
      %1191 = vmatprep.subr.mxu0 0.0
      %1192 = vmatpush1.msra.mxu0 0.0
      %1193 = vmatprep.subr.mxu0 0.0
      %1194 = vmatpush1.msra.mxu0 0.0
      %1195 = vmatprep.subr.mxu0 0.0
      %1196 = vmatpush1.msra.mxu0 0.0
      %1197 = vmatprep.subr.mxu0 0.0
      %1198 = vmatpush1.msra.mxu0 0.0
      %1199 = vmatprep.subr.mxu0 0.0
      %1200 = vmatpush1.msra.mxu0 0.0
      %1201 = vmatprep.subr.mxu0 0.0
      %1202 = vmatpush1.msra.mxu0 0.0
      %1203 = vmatprep.subr.mxu0 0.0
      %1204 = vmatpush1.msra.mxu0 0.0
      %1205 = vmatprep.subr.mxu0 0.0
      %1206 = vmatpush1.msra.mxu0 0.0
      %1207 = vmatprep.subr.mxu0 0.0
      %1208 = vmatpush1.msra.mxu0 0.0
      %1209 = vmatprep.subr.mxu0 0.0
      %1210 = vmatpush1.msra.mxu0 %v1176
      %1211 = vmatprep.subr.mxu0 0.0
      %1212 = vmatpush1.msra.mxu0 %v1175
      %1213 = vmatprep.subr.mxu0 0.0
      %1214 = vmatpush1.msra.mxu0 %v1174
      %1215 = vmatprep.subr.mxu0 0.0
      %1216 = vmatpush1.msra.mxu0 %v1173
      %1217 = vmatprep.subr.mxu0 0.0
      %1218 = vmatpush2.msra.mxu0 0.0
      %1219 = vmatprep.subr.mxu0 0.0
      %1220 = vmatpush2.msra.mxu0 0.0
      %1221 = vmatprep.subr.mxu0 0.0
      %1222 = vmatpush2.msra.mxu0 0.0
      %1223 = vmatprep.subr.mxu0 0.0
      %1224 = vmatpush2.msra.mxu0 0.0
      %1225 = vmatprep.subr.mxu0 0.0
      %1226 = vmatpush2.msra.mxu0 0.0
      %1227 = vmatprep.subr.mxu0 0.0
      %1228 = vmatpush2.msra.mxu0 0.0
      %1229 = vmatprep.subr.mxu0 0.0
      %1230 = vmatpush2.msra.mxu0 0.0
      %1231 = vmatprep.subr.mxu0 0.0
      %1232 = vmatpush2.msra.mxu0 0.0
      %1233 = vmatprep.subr.mxu0 0.0
      %1234 = vmatpush2.msra.mxu0 0.0
      %1235 = vmatprep.subr.mxu0 0.0
      %1236 = vmatpush2.msra.mxu0 0.0
      %1237 = vmatprep.subr.mxu0 0.0
      %1238 = vmatpush2.msra.mxu0 0.0
      %1239 = vmatprep.subr.mxu0 0.0
      %1240 = vmatpush2.msra.mxu0 0.0
      %1241 = vmatprep.subr.mxu0 0.0
      %1242 = vmatpush2.msra.mxu0 0.0
      %1243 = vmatprep.subr.mxu0 0.0
      %1244 = vmatpush2.msra.mxu0 0.0
      %1245 = vmatprep.subr.mxu0 0.0
      %1246 = vmatpush2.msra.mxu0 0.0
      %1247 = vmatprep.subr.mxu0 0.0
      %1248 = vmatpush2.msra.mxu0 0.0
      %1249 = vmatprep.mubr.f32.mxu0 0.0
      %1250 = vmatmul.mubr.f32.gmra.mxu0 %v1183
      %v1251 = vpop.f32.mrf.mxu0
      %v1252 = vadd.f32 %v1181, %v1251
      %v1253 = vpop.f32.mrf.mxu0
      %1254 = vdwg.mxu0
      %v1255 = vmax.f32 %v1252, 0.0
      %v1256 = vld [vmem:[%s5] sm:$0xff]
      %v1257 = vld [vmem:[%s5 + $0x8] sm:$0xff]
      %v1258 = vld [vmem:[%s5 + $0x10] sm:$0xff]
      %v1259 = vld [vmem:[%s5 + $0x18] sm:$0xff]
      %v1260 = vld [vmem:[%s5 + $0x20] sm:$0xff]
      %v1261 = vld [vmem:[%s5 + $0x28] sm:$0xff]
      %v1262 = vld [vmem:[%s5 + $0x30] sm:$0xff]
      %v1263 = vld [vmem:[%s5 + $0x38] sm:$0xff]
      %v1264 = vld [vmem:[%s6 + $0x3] sm:$0x1]
      %v1265 = vlaneseq
      %v1266 = vshrl.u32 %v1265, 7
      %v1267 = vsub.s32 0, %v1266
      %v1268 = vrot.slane %v1264, %v1267
      %vm1269 = vcmask 523264
      %v1271 = vsel %vm1269, %v1255, 0
      %1273 = vmatprep.subr.mxu0 0.0
      %1274 = vmatpush1.msra.mxu0 0.0
      %1275 = vmatprep.subr.mxu0 0.0
      %1276 = vmatpush1.msra.mxu0 0.0
      %1277 = vmatprep.subr.mxu0 0.0
      %1278 = vmatpush1.msra.mxu0 0.0
      %1279 = vmatprep.subr.mxu0 0.0
      %1280 = vmatpush1.msra.mxu0 0.0
      %1281 = vmatprep.subr.mxu0 0.0
      %1282 = vmatpush1.msra.mxu0 0.0
      %1283 = vmatprep.subr.mxu0 0.0
      %1284 = vmatpush1.msra.mxu0 0.0
      %1285 = vmatprep.subr.mxu0 0.0
      %1286 = vmatpush1.msra.mxu0 0.0
      %1287 = vmatprep.subr.mxu0 0.0
      %1288 = vmatpush1.msra.mxu0 0.0
      %1289 = vmatprep.subr.mxu0 0.0
      %1290 = vmatpush1.msra.mxu0 %v1263
      %1291 = vmatprep.subr.mxu0 0.0
      %1292 = vmatpush1.msra.mxu0 %v1262
      %1293 = vmatprep.subr.mxu0 0.0
      %1294 = vmatpush1.msra.mxu0 %v1261
      %1295 = vmatprep.subr.mxu0 0.0
      %1296 = vmatpush1.msra.mxu0 %v1260
      %1297 = vmatprep.subr.mxu0 0.0
      %1298 = vmatpush1.msra.mxu0 %v1259
      %1299 = vmatprep.subr.mxu0 0.0
      %1300 = vmatpush1.msra.mxu0 %v1258
      %1301 = vmatprep.subr.mxu0 0.0
      %1302 = vmatpush1.msra.mxu0 %v1257
      %1303 = vmatprep.subr.mxu0 0.0
      %1304 = vmatpush1.msra.mxu0 %v1256
      %1305 = vmatprep.subr.mxu0 0.0
      %1306 = vmatpush2.msra.mxu0 0.0
      %1307 = vmatprep.subr.mxu0 0.0
      %1308 = vmatpush2.msra.mxu0 0.0
      %1309 = vmatprep.subr.mxu0 0.0
      %1310 = vmatpush2.msra.mxu0 0.0
      %1311 = vmatprep.subr.mxu0 0.0
      %1312 = vmatpush2.msra.mxu0 0.0
      %1313 = vmatprep.subr.mxu0 0.0
      %1314 = vmatpush2.msra.mxu0 0.0
      %1315 = vmatprep.subr.mxu0 0.0
      %1316 = vmatpush2.msra.mxu0 0.0
      %1317 = vmatprep.subr.mxu0 0.0
      %1318 = vmatpush2.msra.mxu0 0.0
      %1319 = vmatprep.subr.mxu0 0.0
      %1320 = vmatpush2.msra.mxu0 0.0
      %1321 = vmatprep.subr.mxu0 0.0
      %1322 = vmatpush2.msra.mxu0 0.0
      %1323 = vmatprep.subr.mxu0 0.0
      %1324 = vmatpush2.msra.mxu0 0.0
      %1325 = vmatprep.subr.mxu0 0.0
      %1326 = vmatpush2.msra.mxu0 0.0
      %1327 = vmatprep.subr.mxu0 0.0
      %1328 = vmatpush2.msra.mxu0 0.0
      %1329 = vmatprep.subr.mxu0 0.0
      %1330 = vmatpush2.msra.mxu0 0.0
      %1331 = vmatprep.subr.mxu0 0.0
      %1332 = vmatpush2.msra.mxu0 0.0
      %1333 = vmatprep.subr.mxu0 0.0
      %1334 = vmatpush2.msra.mxu0 0.0
      %1335 = vmatprep.subr.mxu0 0.0
      %1336 = vmatpush2.msra.mxu0 0.0
      %1337 = vmatprep.mubr.f32.mxu0 0.0
      %1338 = vmatmul.mubr.f32.gmra.mxu0 %v1271
      %v1339 = vpop.f32.mrf.mxu0
      %v1340 = vadd.f32 %v1268, %v1339
      %v1341 = vpop.f32.mrf.mxu0
      %1342 = vdwg.mxu0
      %v1343 = vadd.f32 %v1172, %v1340
      %v1344 = vsel %vm298, %v1343, 0.0
      %1345 = vadd.xlane.f32.xlu0 %v1344
      %v1346 = vpop.xlane.xlu0 %1345
      %v1347 = vmul.f32 %v1346, %v1148
      %v1348 = vmul.f32 %v1343, %v1343
      %v1349 = vsel %vm298, %v1348, 0.0
      %1350 = vadd.xlane.f32.xlu0 %v1349
      %v1351 = vpop.xlane.xlu0 %1350
      %v1352 = vmul.f32 %v1351, %v1148
      %v1353 = vsub.f32 %v1343, %v1347
      %v1354 = vmul.f32 %v1347, %v1347
      %v1355 = vsub.f32 %v1352, %v1354
      %v1356 = vadd.f32 %v1355, 1e-05
      %v1357 = vrsqrt.pop %v1356
      %v1358 = vmul.f32 %v1353, %v1357
      %v1359 = vld [vmem:[%s6 + $0x6] sm:$0x1]
      %v1360 = vlaneseq
      %v1361 = vshrl.u32 %v1360, 7
      %v1362 = vsub.s32 0, %v1361
      %v1363 = vrot.slane %v1359, %v1362
      %v1364 = vmul.f32 %v1358, %v1363
      %v1365 = vld [vmem:[%s6 + $0x7] sm:$0x1]
      %v1366 = vlaneseq
      %v1367 = vshrl.u32 %v1366, 7
      %v1368 = vsub.s32 0, %v1367
      %v1369 = vrot.slane %v1365, %v1368
      %v1370 = vadd.f32 %v1364, %v1369
      %1371 = vst.msk [vmem:[%s287] sm:$0xff] %vm298, %v1370
      %p1372 = scmp.lt.s32.totalorder %s18, 1
      %s1373 = scalar_select %p1372, %s18, 1
      %s1374 = smul.addr %s1373, 8
      %s1375 = scalar_lea.vmem %s7, %s1374
      // Predicated region
      $region49: #{transformer_encoder_layer.1} parent=47 // pred_check
        %p1376 = pneg %p193
      $region50: #{transformer_encoder_layer.1} parent=47 // pred_check_branch
        %1378 = sbr.rel (%p1376) target = $region52
      $region51: #{transformer_encoder_layer.1} parent=47 // pred_region
        _
      $region52: #{transformer_encoder_layer.1} parent=47 // pred_fallthru
        _
    $region48: #{transformer_encoder_layer.1} parent=5 // pred_fallthru
      _
    %p1379 = scmp.le.s32.totalorder 2, %s13
    // Predicated region
    $region53: #{transformer_encoder_layer.1} parent=5 // pred_check
      %p1380 = pneg %p1379
    $region54: #{transformer_encoder_layer.1} parent=5 // pred_check_branch
      %1382 = sbr.rel (%p1380) target = $region56
    $region55: #{transformer_encoder_layer.1} parent=5 // pred_region
      %s1383 = ssub.s32 %s13, 2
      // Predicated region
      $region57: #{transformer_encoder_layer.1} parent=55 // pred_check
        %p1384 = pneg %p199
      $region58: #{transformer_encoder_layer.1} parent=55 // pred_check_branch
        %1386 = sbr.rel (%p1384) target = $region60
      $region59: #{transformer_encoder_layer.1} parent=55 // pred_region
        %p1387 = scmp.lt.s32.totalorder %s19, 1
        %s1388 = scalar_select %p1387, %s19, 1
        %s1389 = smul.addr %s1388, 8
        %s1390 = scalar_lea.vmem %s7, %s1389
      $region60: #{transformer_encoder_layer.1} parent=55 // pred_fallthru
        _
    $region56: #{transformer_encoder_layer.1} parent=5 // pred_fallthru
      _
  $region6: #{transformer_encoder_layer.1} parent=0 // loop_footer
    %s17 = sadd.s32 1, %s13
  $region7: #{transformer_encoder_layer.1} parent=0 // loop_footer_branch
    %12 = sbr.rel target = $region3
  $region8: #{transformer_encoder_layer.1} parent=0 // loop_exit
    _

</llo_original>
